<compile_context>
chip_gen: v7x
topology: tpu7x:2x2x1
jax: 0.10.0
libtpu: 0.0.40
codegen_flags: <defaults>
</compile_context>

<pallas_src>
import functools

import jax
import jax.numpy as jnp
import numpy as np
from jax.experimental import pallas as pl
from jax.experimental.pallas import tpu as pltpu

_VMEM = pl.BlockSpec(memory_space=pltpu.MemorySpace.VMEM)
_SMEM = pl.BlockSpec(memory_space=pltpu.MemorySpace.SMEM)


# ------------------------------- fused kernel --------------------------------

def _lstm_gates(x_full, c_prev, w_full, b):
    """nn.LSTMCell with the two matmuls fused: [x|h] @ [W_ih ; W_hh] + (b_ih+b_hh)."""
    H = c_prev.shape[-1]
    gates = jnp.dot(x_full, w_full, preferred_element_type=jnp.float32) + b  # (B, 4H)
    i = jax.nn.sigmoid(gates[:, 0 * H:1 * H])
    f = jax.nn.sigmoid(gates[:, 1 * H:2 * H])
    g = jnp.tanh(gates[:, 2 * H:3 * H])
    o = jax.nn.sigmoid(gates[:, 3 * H:4 * H])
    c_new = f * c_prev + i * g
    h_new = o * jnp.tanh(c_new)
    return h_new, c_new


def _fused_topdown_kernel(has_mask, *refs):
    if has_mask:
        (xt_ref, fc_ref, hs_ref, cs_ref, pattr_ref, attr_ref, mask_ref,
         w_att_ref, b_att_ref, w_lang_ref, b_lang_ref,
         w_h2att_ref, b_h2att_ref, w_alpha_ref, b_alpha_ref, out_ref) = refs
    else:
        (xt_ref, fc_ref, hs_ref, cs_ref, pattr_ref, attr_ref,
         w_att_ref, b_att_ref, w_lang_ref, b_lang_ref,
         w_h2att_ref, b_h2att_ref, w_alpha_ref, b_alpha_ref, out_ref) = refs
        mask_ref = None

    h0 = hs_ref[0]              # att_lstm hidden            (B, R)
    h1 = hs_ref[1]              # lang_lstm hidden == prev_h (B, R)
    c0 = cs_ref[0]
    c1 = cs_ref[1]

    # --- att_lstm: one fused matmul over [prev_h, fc, xt | h0] ---------------
    x_att = jnp.concatenate([h1, fc_ref[...], xt_ref[...], h0], axis=1)
    h_att, c_att = _lstm_gates(x_att, c0, w_att_ref[...], b_att_ref[...])

    # --- attention over attr feats -------------------------------------------
    B, L, A = pattr_ref.shape
    att_h = (jnp.dot(h_att, w_h2att_ref[...], preferred_element_type=jnp.float32)
             + b_h2att_ref[...])                                   # (B, A)
    dot = jnp.tanh(pattr_ref[...] + att_h[:, None, :])             # (B, L, A)
    # alpha_net as an MXU contraction over A
    scores = (jnp.dot(dot.reshape(B * L, A), w_alpha_ref[...],
                      preferred_element_type=jnp.float32)
              .reshape(B, L) + b_alpha_ref[0])                     # (B, L)
    m = jnp.max(scores, axis=1, keepdims=True)
    e = jnp.exp(scores - m)
    weight = e / jnp.sum(e, axis=1, keepdims=True)                 # softmax over L
    if mask_ref is not None:
        # post-softmax masking + renormalize (matches the PyTorch module).
        weight = weight * mask_ref[...]
        weight = weight / jnp.sum(weight, axis=1, keepdims=True)
    # weighted sum over L as a batched MXU contraction (torch.bmm equivalent)
    att_attr = jnp.einsum('bql,blr->bqr', weight[:, None, :], attr_ref[...],
                          preferred_element_type=jnp.float32)[:, 0, :]   # (B, R)

    # --- lang_lstm: one fused matmul over [att_attr, h_att | h1] -------------
    x_lang = jnp.concatenate([att_attr, h_att, h1], axis=1)
    h_lang, c_lang = _lstm_gates(x_lang, c1, w_lang_ref[...], b_lang_ref[...])

    # --- lane-dense output slab [h_att | c_att | h_lang | c_lang] = (B, 4R) --
    out_ref[...] = jnp.concatenate([h_att, c_att, h_lang, c_lang],
                                   axis=1).astype(out_ref.dtype)


# --------------------------------- wrapper -----------------------------------

def _pad_batch(x, b_pad):
    pad = b_pad - x.shape[0]
    if pad == 0:
        return x
    return jnp.pad(x, [(0, pad)] + [(0, 0)] * (x.ndim - 1))


def topdown_core_forward(params, xt, fc_feats, att_feats, p_att_feats, state,
                         attr_feats, p_attr_feats, att_masks=None):
    del att_feats, p_att_feats          # not used by TopDownCore.forward
    state_h, state_c = state            # each (2, B, R)
    B, R = state_h.shape[1], state_h.shape[2]
    L = attr_feats.shape[1]

    # Pad batch to a full 8-sublane tile so every kernel tile is dense.
    B_pad = max(8, -(-B // 8) * 8)
    xt_p = _pad_batch(xt, B_pad)
    fc_p = _pad_batch(fc_feats, B_pad)
    hs_p = jnp.pad(state_h, ((0, 0), (0, B_pad - B), (0, 0)))
    cs_p = jnp.pad(state_c, ((0, 0), (0, B_pad - B), (0, 0)))
    attr_p = _pad_batch(attr_feats, B_pad)
    pattr_p = _pad_batch(p_attr_feats, B_pad)

    has_mask = att_masks is not None
    inputs = [xt_p, fc_p, hs_p, cs_p, pattr_p, attr_p]
    if has_mask:
        mask = att_masks.reshape(B, L).astype(jnp.float32)
        if B_pad > B:  # pad rows with ones so the padded renormalize never divides by 0
            mask = jnp.concatenate([mask, jnp.ones((B_pad - B, L), jnp.float32)], axis=0)
        inputs.append(mask)
    inputs += [params["att_w"], params["att_b"],
               params["lang_w"], params["lang_b"],
               params["w_h2att"], params["b_h2att"],
               params["w_alpha"], params["b_alpha"]]

    in_specs = [_VMEM] * (len(inputs) - 1) + [_SMEM]   # b_alpha scalar -> SMEM

    out = pl.pallas_call(
        functools.partial(_fused_topdown_kernel, has_mask),
        out_shape=jax.ShapeDtypeStruct((B_pad, 4 * R), jnp.float32),
        in_specs=in_specs,
        out_specs=_VMEM,
    )(*inputs)

    h_att = out[:B, 0 * R:1 * R]
    c_att = out[:B, 1 * R:2 * R]
    h_lang = out[:B, 2 * R:3 * R]
    c_lang = out[:B, 3 * R:4 * R]
    output = h_lang  # F.dropout(h_lang, p, training=False) is identity
    new_state = (jnp.stack([h_att, h_lang]), jnp.stack([c_att, c_lang]))
    return output, new_state


# ----------------------------- pure-JAX reference ----------------------------

def _ref_lstm(x_full, c, w_full, b):
    H = c.shape[-1]
    g = x_full @ w_full + b
    i = jax.nn.sigmoid(g[:, :H])
    f = jax.nn.sigmoid(g[:, H:2 * H])
    gg = jnp.tanh(g[:, 2 * H:3 * H])
    o = jax.nn.sigmoid(g[:, 3 * H:])
    c_new = f * c + i * gg
    return o * jnp.tanh(c_new), c_new


def _ref_forward(params, xt, fc_feats, state, attr_feats, p_attr_feats,
                 att_masks=None):
    state_h, state_c = state
    prev_h = state_h[-1]
    x_att = jnp.concatenate([prev_h, fc_feats, xt, state_h[0]], axis=1)
    h_att, c_att = _ref_lstm(x_att, state_c[0], params["att_w"], params["att_b"])
    att_h = h_att @ params["w_h2att"] + params["b_h2att"]
    dot = jnp.tanh(p_attr_feats + att_h[:, None, :])
    scores = jnp.sum(dot * params["w_alpha"][:, 0], axis=-1) + params["b_alpha"][0]
    weight = jax.nn.softmax(scores, axis=1)
    if att_masks is not None:
        weight = weight * att_masks.astype(jnp.float32)
        weight = weight / weight.sum(1, keepdims=True)
    att_attr = jnp.sum(weight[:, :, None] * attr_feats, axis=1)
    x_lang = jnp.concatenate([att_attr, h_att, state_h[1]], axis=1)
    h_lang, c_lang = _ref_lstm(x_lang, state_c[1], params["lang_w"], params["lang_b"])
    return h_lang, (jnp.stack([h_att, h_lang]), jnp.stack([c_att, c_lang]))


# ------------------------------------ main ------------------------------------

if __name__ == "__main__":
    # opt: input_encoding_size=16, rnn_size=32, att_hid_size=24, L=8 attr regions
    B, E, R, A, L = 4, 16, 32, 24, 8
    key = jax.random.PRNGKey(0)
    ks = jax.random.split(key, 20)

    def uni(k, shape, scale):
        return jax.random.uniform(k, shape, jnp.float32, -scale, scale)

    s = 1.0 / np.sqrt(R)
    params = {
        # att_lstm: stacked [W_ih ; W_hh] for input [prev_h, fc, xt | h0]
        "att_w":  uni(ks[0], (E + 3 * R, 4 * R), s),
        "att_b":  uni(ks[1], (1, 4 * R), s),        # b_ih + b_hh folded together
        # lang_lstm: stacked [W_ih ; W_hh] for input [att_attr, h_att | h1]
        "lang_w": uni(ks[2], (3 * R, 4 * R), s),
        "lang_b": uni(ks[3], (1, 4 * R), s),
        # attention_attr
        "w_h2att": uni(ks[4], (R, A), 1.0 / np.sqrt(R)),
        "b_h2att": uni(ks[5], (1, A), 1.0 / np.sqrt(R)),
        "w_alpha": uni(ks[6], (A, 1), 1.0 / np.sqrt(A)),
        "b_alpha": uni(ks[7], (1,), 1.0 / np.sqrt(A)),
    }

    xt = jax.random.normal(ks[10], (B, E), jnp.float32)
    fc_feats = jax.random.normal(ks[11], (B, R), jnp.float32)
    att_feats = jax.random.normal(ks[12], (B, L, R), jnp.float32)     # unused by forward
    p_att_feats = jax.random.normal(ks[13], (B, L, A), jnp.float32)   # unused by forward
    attr_feats = jax.random.normal(ks[14], (B, L, R), jnp.float32)
    p_attr_feats = jax.random.normal(ks[15], (B, L, A), jnp.float32)
    state = (jax.random.normal(ks[16], (2, B, R), jnp.float32) * 0.1,
             jax.random.normal(ks[17], (2, B, R), jnp.float32) * 0.1)

    # --- no-mask path ---------------------------------------------------------
    output, new_state = topdown_core_forward(
        params, xt, fc_feats, att_feats, p_att_feats, state,
        attr_feats, p_attr_feats, att_masks=None)
    output = jax.block_until_ready(output)
    new_state = jax.block_until_ready(new_state)

    ref_out, ref_state = _ref_forward(params, xt, fc_feats, state,
                                      attr_feats, p_attr_feats, att_masks=None)
    np.testing.assert_allclose(np.asarray(output), np.asarray(ref_out),
                               rtol=1e-5, atol=1e-5)
    np.testing.assert_allclose(np.asarray(new_state[0]), np.asarray(ref_state[0]),
                               rtol=1e-5, atol=1e-5)
    np.testing.assert_allclose(np.asarray(new_state[1]), np.asarray(ref_state[1]),
                               rtol=1e-5, atol=1e-5)

    # --- masked path (post-softmax mask + renormalize, as in the PyTorch code)
    lengths = jnp.array([L, 5, L, 3], jnp.int32)
    att_masks = (jnp.arange(L)[None, :] < lengths[:, None]).astype(jnp.float32)
    out_m, state_m = topdown_core_forward(
        params, xt, fc_feats, att_feats, p_att_feats, state,
        attr_feats, p_attr_feats, att_masks=att_masks)
    out_m = jax.block_until_ready(out_m)
    ref_out_m, ref_state_m = _ref_forward(params, xt, fc_feats, state,
                                          attr_feats, p_attr_feats,
                                          att_masks=att_masks)
    np.testing.assert_allclose(np.asarray(out_m), np.asarray(ref_out_m),
                               rtol=1e-5, atol=1e-5)
    np.testing.assert_allclose(np.asarray(state_m[0]), np.asarray(ref_state_m[0]),
                               rtol=1e-5, atol=1e-5)
    np.testing.assert_allclose(np.asarray(state_m[1]), np.asarray(ref_state_m[1]),
                               rtol=1e-5, atol=1e-5)

    print("KERNEL_OK")
</pallas_src>

<mosaic_0001>
module attributes {stable_mosaic.version = 11 : i64} {
  func.func @_fused_topdown_kernel(%arg0: memref<8x16xf32, #tpu.memory_space<vmem>>, %arg1: memref<8x32xf32, #tpu.memory_space<vmem>>, %arg2: memref<2x8x32xf32, #tpu.memory_space<vmem>>, %arg3: memref<2x8x32xf32, #tpu.memory_space<vmem>>, %arg4: memref<8x8x24xf32, #tpu.memory_space<vmem>>, %arg5: memref<8x8x32xf32, #tpu.memory_space<vmem>>, %arg6: memref<112x128xf32, #tpu.memory_space<vmem>>, %arg7: memref<1x128xf32, #tpu.memory_space<vmem>>, %arg8: memref<96x128xf32, #tpu.memory_space<vmem>>, %arg9: memref<1x128xf32, #tpu.memory_space<vmem>>, %arg10: memref<32x24xf32, #tpu.memory_space<vmem>>, %arg11: memref<1x24xf32, #tpu.memory_space<vmem>>, %arg12: memref<24x1xf32, #tpu.memory_space<vmem>>, %arg13: memref<1xf32, #tpu.memory_space<smem>>, %arg14: memref<8x128xf32, #tpu.memory_space<vmem>>) attributes {dimension_semantics = [], scalar_prefetch = 0 : i64, scratch_operands = 0 : i64, tpu.core_type = #tpu.core_type<tc>} {
    %c0 = arith.constant 0 : index
    %c0_0 = arith.constant 0 : index
    %c0_1 = arith.constant 0 : index
    %0 = vector.load %arg2[%c0, %c0_0, %c0_1] : memref<2x8x32xf32, #tpu.memory_space<vmem>>, vector<1x8x32xf32>
    %1 = vector.shape_cast %0 : vector<1x8x32xf32> to vector<8x32xf32>
    %c1 = arith.constant 1 : index
    %c0_2 = arith.constant 0 : index
    %c0_3 = arith.constant 0 : index
    %2 = vector.load %arg2[%c1, %c0_2, %c0_3] : memref<2x8x32xf32, #tpu.memory_space<vmem>>, vector<1x8x32xf32>
    %3 = vector.shape_cast %2 : vector<1x8x32xf32> to vector<8x32xf32>
    %c0_4 = arith.constant 0 : index
    %c0_5 = arith.constant 0 : index
    %c0_6 = arith.constant 0 : index
    %4 = vector.load %arg3[%c0_4, %c0_5, %c0_6] : memref<2x8x32xf32, #tpu.memory_space<vmem>>, vector<1x8x32xf32>
    %5 = vector.shape_cast %4 : vector<1x8x32xf32> to vector<8x32xf32>
    %c1_7 = arith.constant 1 : index
    %c0_8 = arith.constant 0 : index
    %c0_9 = arith.constant 0 : index
    %6 = vector.load %arg3[%c1_7, %c0_8, %c0_9] : memref<2x8x32xf32, #tpu.memory_space<vmem>>, vector<1x8x32xf32>
    %7 = vector.shape_cast %6 : vector<1x8x32xf32> to vector<8x32xf32>
    %c0_10 = arith.constant 0 : index
    %c0_11 = arith.constant 0 : index
    %8 = vector.load %arg1[%c0_10, %c0_11] : memref<8x32xf32, #tpu.memory_space<vmem>>, vector<8x32xf32>
    %c0_12 = arith.constant 0 : index
    %c0_13 = arith.constant 0 : index
    %9 = vector.load %arg0[%c0_12, %c0_13] : memref<8x16xf32, #tpu.memory_space<vmem>>, vector<8x16xf32>
    %10 = tpu.concatenate %3, %8, %9, %1 in 1 : vector<8x32xf32>, vector<8x32xf32>, vector<8x16xf32>, vector<8x32xf32> -> vector<8x112xf32>
    %c0_14 = arith.constant 0 : index
    %c0_15 = arith.constant 0 : index
    %11 = vector.load %arg6[%c0_14, %c0_15] : memref<112x128xf32, #tpu.memory_space<vmem>>, vector<112x128xf32>
    %c0_16 = arith.constant 0 : index
    %c0_17 = arith.constant 0 : index
    %12 = vector.load %arg7[%c0_16, %c0_17] : memref<1x128xf32, #tpu.memory_space<vmem>>, vector<1x128xf32>
    %cst = arith.constant dense<0.000000e+00> : vector<8x128xf32>
    %13 = tpu.matmul %10, %11, %cst {dimension_numbers = #tpu.dot_dimension_numbers<[1], [0], [0], [1], [0, 0, 1, 1], [], []>} : vector<8x112xf32>, vector<112x128xf32>, vector<8x128xf32> -> vector<8x128xf32>
    %14 = vector.broadcast %12 : vector<1x128xf32> to vector<8x128xf32>
    %15 = arith.addf %13, %14 : vector<8x128xf32>
    %16 = vector.extract_strided_slice %15 {offsets = [0, 0], sizes = [8, 32], strides = [1, 1]} : vector<8x128xf32> to vector<8x32xf32>
    %17 = arith.negf %16 : vector<8x32xf32>
    %18 = math.exp %17 : vector<8x32xf32>
    %cst_18 = arith.constant 1.000000e+00 : f32
    %19 = vector.broadcast %cst_18 : f32 to vector<8x32xf32>
    %20 = arith.addf %19, %18 : vector<8x32xf32>
    %21 = arith.divf %19, %20 : vector<8x32xf32>
    %22 = vector.extract_strided_slice %15 {offsets = [0, 32], sizes = [8, 32], strides = [1, 1]} : vector<8x128xf32> to vector<8x32xf32>
    %23 = arith.negf %22 : vector<8x32xf32>
    %24 = math.exp %23 : vector<8x32xf32>
    %cst_19 = arith.constant 1.000000e+00 : f32
    %25 = vector.broadcast %cst_19 : f32 to vector<8x32xf32>
    %26 = arith.addf %25, %24 : vector<8x32xf32>
    %27 = arith.divf %25, %26 : vector<8x32xf32>
    %28 = vector.extract_strided_slice %15 {offsets = [0, 64], sizes = [8, 32], strides = [1, 1]} : vector<8x128xf32> to vector<8x32xf32>
    %29 = math.tanh %28 : vector<8x32xf32>
    %30 = vector.extract_strided_slice %15 {offsets = [0, 96], sizes = [8, 32], strides = [1, 1]} : vector<8x128xf32> to vector<8x32xf32>
    %31 = arith.negf %30 : vector<8x32xf32>
    %32 = math.exp %31 : vector<8x32xf32>
    %cst_20 = arith.constant 1.000000e+00 : f32
    %33 = vector.broadcast %cst_20 : f32 to vector<8x32xf32>
    %34 = arith.addf %33, %32 : vector<8x32xf32>
    %35 = arith.divf %33, %34 : vector<8x32xf32>
    %36 = arith.mulf %27, %5 : vector<8x32xf32>
    %37 = arith.mulf %21, %29 : vector<8x32xf32>
    %38 = arith.addf %36, %37 : vector<8x32xf32>
    %39 = math.tanh %38 : vector<8x32xf32>
    %40 = arith.mulf %35, %39 : vector<8x32xf32>
    %c0_21 = arith.constant 0 : index
    %c0_22 = arith.constant 0 : index
    %41 = vector.load %arg10[%c0_21, %c0_22] : memref<32x24xf32, #tpu.memory_space<vmem>>, vector<32x24xf32>
    %cst_23 = arith.constant dense<0.000000e+00> : vector<8x24xf32>
    %42 = tpu.matmul %40, %41, %cst_23 {dimension_numbers = #tpu.dot_dimension_numbers<[1], [0], [0], [1], [0, 0, 1, 1], [], []>} : vector<8x32xf32>, vector<32x24xf32>, vector<8x24xf32> -> vector<8x24xf32>
    %c0_24 = arith.constant 0 : index
    %c0_25 = arith.constant 0 : index
    %43 = vector.load %arg11[%c0_24, %c0_25] : memref<1x24xf32, #tpu.memory_space<vmem>>, vector<1x24xf32>
    %44 = vector.broadcast %43 : vector<1x24xf32> to vector<8x24xf32>
    %45 = arith.addf %42, %44 : vector<8x24xf32>
    %c0_26 = arith.constant 0 : index
    %c0_27 = arith.constant 0 : index
    %c0_28 = arith.constant 0 : index
    %46 = vector.load %arg4[%c0_26, %c0_27, %c0_28] : memref<8x8x24xf32, #tpu.memory_space<vmem>>, vector<8x8x24xf32>
    %47 = vector.shape_cast %45 : vector<8x24xf32> to vector<8x1x24xf32>
    %48 = vector.broadcast %47 : vector<8x1x24xf32> to vector<8x8x24xf32>
    %49 = arith.addf %46, %48 : vector<8x8x24xf32>
    %50 = math.tanh %49 : vector<8x8x24xf32>
    %51 = vector.shape_cast %50 : vector<8x8x24xf32> to vector<64x24xf32>
    %c0_29 = arith.constant 0 : index
    %c0_30 = arith.constant 0 : index
    %52 = vector.load %arg12[%c0_29, %c0_30] : memref<24x1xf32, #tpu.memory_space<vmem>>, vector<24x1xf32>
    %cst_31 = arith.constant dense<0.000000e+00> : vector<64x1xf32>
    %53 = tpu.matmul %51, %52, %cst_31 {dimension_numbers = #tpu.dot_dimension_numbers<[1], [0], [0], [1], [0, 0, 1, 1], [], []>} : vector<64x24xf32>, vector<24x1xf32>, vector<64x1xf32> -> vector<64x1xf32>
    %54 = vector.shape_cast %53 : vector<64x1xf32> to vector<8x8xf32>
    %c0_32 = arith.constant 0 : index
    %55 = memref.load %arg13[%c0_32] : memref<1xf32, #tpu.memory_space<smem>>
    %56 = vector.broadcast %55 : f32 to vector<8x8xf32>
    %57 = arith.addf %54, %56 : vector<8x8xf32>
    %cst_33 = arith.constant dense<0xFF800000> : vector<8xf32>
    %58 = vector.multi_reduction <maximumf>, %57, %cst_33 [1] : vector<8x8xf32> to vector<8xf32>
    %59 = vector.shape_cast %58 : vector<8xf32> to vector<8x1xf32>
    %60 = vector.broadcast %59 : vector<8x1xf32> to vector<8x8xf32>
    %61 = arith.subf %57, %60 : vector<8x8xf32>
    %62 = math.exp %61 : vector<8x8xf32>
    %cst_34 = arith.constant dense<0.000000e+00> : vector<8xf32>
    %63 = vector.multi_reduction <add>, %62, %cst_34 [1] : vector<8x8xf32> to vector<8xf32>
    %64 = vector.shape_cast %63 : vector<8xf32> to vector<8x1xf32>
    %65 = vector.broadcast %64 : vector<8x1xf32> to vector<8x8xf32>
    %66 = arith.divf %62, %65 : vector<8x8xf32>
    %67 = vector.shape_cast %66 : vector<8x8xf32> to vector<8x1x8xf32>
    %c0_35 = arith.constant 0 : index
    %c0_36 = arith.constant 0 : index
    %c0_37 = arith.constant 0 : index
    %68 = vector.load %arg5[%c0_35, %c0_36, %c0_37] : memref<8x8x32xf32, #tpu.memory_space<vmem>>, vector<8x8x32xf32>
    "tpu.trace_start"() <{level = 10 : i32, message = "bql,blr->bqr"}> : () -> ()
    %cst_38 = arith.constant dense<0.000000e+00> : vector<8x1x32xf32>
    %69 = tpu.matmul %67, %68, %cst_38 {dimension_numbers = #tpu.dot_dimension_numbers<[2], [1], [1], [2], [0, 0, 0, 1, 1, 2], [0], [0]>} : vector<8x1x8xf32>, vector<8x8x32xf32>, vector<8x1x32xf32> -> vector<8x1x32xf32>
    "tpu.trace_stop"() : () -> ()
    %70 = vector.shape_cast %69 : vector<8x1x32xf32> to vector<8x32xf32>
    %71 = tpu.concatenate %70, %40, %3 in 1 : vector<8x32xf32>, vector<8x32xf32>, vector<8x32xf32> -> vector<8x96xf32>
    %c0_39 = arith.constant 0 : index
    %c0_40 = arith.constant 0 : index
    %72 = vector.load %arg8[%c0_39, %c0_40] : memref<96x128xf32, #tpu.memory_space<vmem>>, vector<96x128xf32>
    %c0_41 = arith.constant 0 : index
    %c0_42 = arith.constant 0 : index
    %73 = vector.load %arg9[%c0_41, %c0_42] : memref<1x128xf32, #tpu.memory_space<vmem>>, vector<1x128xf32>
    %cst_43 = arith.constant dense<0.000000e+00> : vector<8x128xf32>
    %74 = tpu.matmul %71, %72, %cst_43 {dimension_numbers = #tpu.dot_dimension_numbers<[1], [0], [0], [1], [0, 0, 1, 1], [], []>} : vector<8x96xf32>, vector<96x128xf32>, vector<8x128xf32> -> vector<8x128xf32>
    %75 = vector.broadcast %73 : vector<1x128xf32> to vector<8x128xf32>
    %76 = arith.addf %74, %75 : vector<8x128xf32>
    %77 = vector.extract_strided_slice %76 {offsets = [0, 0], sizes = [8, 32], strides = [1, 1]} : vector<8x128xf32> to vector<8x32xf32>
    %78 = arith.negf %77 : vector<8x32xf32>
    %79 = math.exp %78 : vector<8x32xf32>
    %cst_44 = arith.constant 1.000000e+00 : f32
    %80 = vector.broadcast %cst_44 : f32 to vector<8x32xf32>
    %81 = arith.addf %80, %79 : vector<8x32xf32>
    %82 = arith.divf %80, %81 : vector<8x32xf32>
    %83 = vector.extract_strided_slice %76 {offsets = [0, 32], sizes = [8, 32], strides = [1, 1]} : vector<8x128xf32> to vector<8x32xf32>
    %84 = arith.negf %83 : vector<8x32xf32>
    %85 = math.exp %84 : vector<8x32xf32>
    %cst_45 = arith.constant 1.000000e+00 : f32
    %86 = vector.broadcast %cst_45 : f32 to vector<8x32xf32>
    %87 = arith.addf %86, %85 : vector<8x32xf32>
    %88 = arith.divf %86, %87 : vector<8x32xf32>
    %89 = vector.extract_strided_slice %76 {offsets = [0, 64], sizes = [8, 32], strides = [1, 1]} : vector<8x128xf32> to vector<8x32xf32>
    %90 = math.tanh %89 : vector<8x32xf32>
    %91 = vector.extract_strided_slice %76 {offsets = [0, 96], sizes = [8, 32], strides = [1, 1]} : vector<8x128xf32> to vector<8x32xf32>
    %92 = arith.negf %91 : vector<8x32xf32>
    %93 = math.exp %92 : vector<8x32xf32>
    %cst_46 = arith.constant 1.000000e+00 : f32
    %94 = vector.broadcast %cst_46 : f32 to vector<8x32xf32>
    %95 = arith.addf %94, %93 : vector<8x32xf32>
    %96 = arith.divf %94, %95 : vector<8x32xf32>
    %97 = arith.mulf %88, %7 : vector<8x32xf32>
    %98 = arith.mulf %82, %90 : vector<8x32xf32>
    %99 = arith.addf %97, %98 : vector<8x32xf32>
    %100 = math.tanh %99 : vector<8x32xf32>
    %101 = arith.mulf %96, %100 : vector<8x32xf32>
    %102 = tpu.concatenate %40, %38, %101, %99 in 1 : vector<8x32xf32>, vector<8x32xf32>, vector<8x32xf32>, vector<8x32xf32> -> vector<8x128xf32>
    %c0_47 = arith.constant 0 : index
    %c0_48 = arith.constant 0 : index
    %103 = vector.load %arg14[%c0_47, %c0_48] : memref<8x128xf32, #tpu.memory_space<vmem>>, vector<8x128xf32>
    tpu.vector_store %arg14[%c0_47, %c0_48], %102 {strides = array<i32>} : memref<8x128xf32, #tpu.memory_space<vmem>>, vector<8x128xf32>,
    return
  }
}

</mosaic_0001>

<llo_original>
// kernel: tpu_custom_call.1
$region0: #{tpu_custom_call.1}
  #allocation0 [shape = 'u32[]', space=smem, size = 0x4, offset = 0x4, fixed_abs, tag = 'smem constant byte address 0x4 - core index']
  #allocation1 [shape = 'u32[144,128]{1,0:T(1,128)}', space=vmem, size = 0x12000, scoped, tag = 'internal scratch']
  #allocation2 [shape = 'f32[1]{0:T(128)S(6)}', space=smem, size = 0x200, scoped, tag = 'scoped memory for tpu_custom_call.1']
  %s0 = inlined_call_operand.hbm [shape: f32[8,16], index: 0, kind: input, shape index: {}]
  %s1 = inlined_call_operand.hbm [shape: f32[8,32], index: 1, kind: input, shape index: {}]
  %s2 = inlined_call_operand.hbm [shape: f32[2,8,32], index: 2, kind: input, shape index: {}]
  %s3 = inlined_call_operand.hbm [shape: f32[2,8,32], index: 3, kind: input, shape index: {}]
  %s4 = inlined_call_operand.hbm [shape: f32[8,8,24], index: 4, kind: input, shape index: {}]
  %s5 = inlined_call_operand.hbm [shape: f32[8,8,32], index: 5, kind: input, shape index: {}]
  %s6 = inlined_call_operand.hbm [shape: f32[112,128], index: 6, kind: input, shape index: {}]
  %s7 = inlined_call_operand.vmem [shape: f32[1,128], index: 7, kind: input, shape index: {}]
  %s8 = inlined_call_operand.vmem [shape: f32[96,128], index: 8, kind: input, shape index: {}]
  %s9 = inlined_call_operand.vmem [shape: f32[1,128], index: 9, kind: input, shape index: {}]
  %s10 = inlined_call_operand.vmem [shape: f32[32,24], index: 10, kind: input, shape index: {}]
  %s11 = inlined_call_operand.vmem [shape: f32[1,24], index: 11, kind: input, shape index: {}]
  %s12 = inlined_call_operand.vmem [shape: f32[24,1], index: 12, kind: input, shape index: {}]
  %s13 = inlined_call_operand.<no memory space> [shape: f32[1], index: 13, kind: input, shape index: {}]
  %s14 = inlined_call_operand.hbm [shape: f32[8,128], index: 14, kind: output, shape index: {}]
  %s15 = sld [smem:[#allocation0]]
  $region94: #{tpu_custom_call.1} parent=0
    _
  %s17 = ssub.s32 1, %s15
  %s18 = scalar_select 0, %s17, %s15
  %19 = sst [smem:[#allocation2]] %s13
  $region1: #{tpu_custom_call.1} parent=0
    #allocation3 [shape = 'u8[4096]{0}', space=vmem, size = 0x1000, scoped, tag = 'input window, operand 0, single buffered']
    #allocation4 [shape = 's32[1]{0}', space=sflag, size = 0x4, scoped, tag = 'scoped memory for tpu_custom_call.1']
    #allocation5 [shape = 's32[1]{0}', space=sflag, size = 0x4, scoped, tag = 'scoped memory for tpu_custom_call.1']
    #allocation6 [shape = 'u8[4096]{0}', space=vmem, size = 0x1000, scoped, tag = 'input window, operand 1, single buffered']
    #allocation7 [shape = 's32[1]{0}', space=sflag, size = 0x4, scoped, tag = 'scoped memory for tpu_custom_call.1']
    #allocation8 [shape = 'u8[8192]{0}', space=vmem, size = 0x2000, scoped, tag = 'input window, operand 2, single buffered']
    #allocation9 [shape = 'u8[8192]{0}', space=vmem, size = 0x2000, scoped, tag = 'input window, operand 3, single buffered']
    #allocation10 [shape = 's32[1]{0}', space=sflag, size = 0x4, scoped, tag = 'scoped memory for tpu_custom_call.1']
    #allocation11 [shape = 'u8[32768]{0}', space=vmem, size = 0x8000, scoped, tag = 'input window, operand 4, single buffered']
    #allocation12 [shape = 'u8[32768]{0}', space=vmem, size = 0x8000, scoped, tag = 'input window, operand 5, single buffered']
    #allocation13 [shape = 's32[1]{0}', space=sflag, size = 0x4, scoped, tag = 'scoped memory for tpu_custom_call.1']
    #allocation14 [shape = 'u8[57344]{0}', space=vmem, size = 0xe000, scoped, tag = 'input window, operand 6, single buffered']
    #allocation15 [shape = 'u8[4096]{0}', space=vmem, size = 0x1000, scoped, tag = 'output window, operand 0, single buffered']
    %20 = vsyncpa [#allocation4], 0
    %21 = vsyncpa [#allocation7], 0
    %22 = vsyncpa [#allocation10], 0
    %23 = vsyncpa [#allocation13], 0
    %24 = vsyncpa [#allocation5], 0
    // Predicated region
    $region2: #{tpu_custom_call.1} parent=1 // pred_check
      _
    $region3: #{tpu_custom_call.1} parent=1 // pred_check_branch
      %26 = sbr.rel (0) target = $region5
    $region4: #{tpu_custom_call.1} parent=1 // pred_region
      %s28 = ssub.s32 128, 128
      %29 = vsyncadd [#allocation4], %s28
      %s31 = sshll.u32 [#allocation3], 4
      %s32 = int_to_ptr.vmem [resolvable:$true] %s31
      %34 = dma.hbm_to_vmem [thread:$0]  %s0, 128, %s32, [#allocation4]
    $region5: #{tpu_custom_call.1} parent=1 // pred_fallthru
      _
    // Predicated region
    $region6: #{tpu_custom_call.1} parent=1 // pred_check
      _
    $region7: #{tpu_custom_call.1} parent=1 // pred_check_branch
      %36 = sbr.rel (0) target = $region9
    $region8: #{tpu_custom_call.1} parent=1 // pred_region
      %s38 = ssub.s32 128, 128
      %39 = vsyncadd [#allocation7], %s38
      %s41 = sshll.u32 [#allocation6], 4
      %s42 = int_to_ptr.vmem [resolvable:$true] %s41
      %44 = dma.hbm_to_vmem [thread:$0]  %s1, 128, %s42, [#allocation7]
    $region9: #{tpu_custom_call.1} parent=1 // pred_fallthru
      _
    // Predicated region
    $region10: #{tpu_custom_call.1} parent=1 // pred_check
      _
    $region11: #{tpu_custom_call.1} parent=1 // pred_check_branch
      %46 = sbr.rel (0) target = $region13
    $region12: #{tpu_custom_call.1} parent=1 // pred_region
      %s48 = ssub.s32 256, 256
      %49 = vsyncadd [#allocation7], %s48
      %s50 = sshll.u32 [#allocation8], 4
      %s51 = int_to_ptr.vmem [resolvable:$true] %s50
      %56 = dma.hbm_to_vmem [thread:$0]  %s2, 256, %s51, [#allocation7], 128, 128, 8
    $region13: #{tpu_custom_call.1} parent=1 // pred_fallthru
      _
    // Predicated region
    $region14: #{tpu_custom_call.1} parent=1 // pred_check
      _
    $region15: #{tpu_custom_call.1} parent=1 // pred_check_branch
      %58 = sbr.rel (0) target = $region17
    $region16: #{tpu_custom_call.1} parent=1 // pred_region
      %s60 = ssub.s32 256, 256
      %61 = vsyncadd [#allocation10], %s60
      %s62 = sshll.u32 [#allocation9], 4
      %s63 = int_to_ptr.vmem [resolvable:$true] %s62
      %68 = dma.hbm_to_vmem [thread:$0]  %s3, 256, %s63, [#allocation10], 128, 128, 8
    $region17: #{tpu_custom_call.1} parent=1 // pred_fallthru
      _
    // Predicated region
    $region18: #{tpu_custom_call.1} parent=1 // pred_check
      _
    $region19: #{tpu_custom_call.1} parent=1 // pred_check_branch
      %70 = sbr.rel (0) target = $region21
    $region20: #{tpu_custom_call.1} parent=1 // pred_region
      %s72 = ssub.s32 1024, 1024
      %73 = vsyncadd [#allocation10], %s72
      %s74 = sshll.u32 [#allocation11], 4
      %s75 = int_to_ptr.vmem [resolvable:$true] %s74
      %80 = dma.hbm_to_vmem [thread:$0]  %s4, 1024, %s75, [#allocation10], 128, 128, 8
    $region21: #{tpu_custom_call.1} parent=1 // pred_fallthru
      _
    // Predicated region
    $region22: #{tpu_custom_call.1} parent=1 // pred_check
      _
    $region23: #{tpu_custom_call.1} parent=1 // pred_check_branch
      %82 = sbr.rel (0) target = $region25
    $region24: #{tpu_custom_call.1} parent=1 // pred_region
      %s84 = ssub.s32 1024, 1024
      %85 = vsyncadd [#allocation13], %s84
      %s86 = sshll.u32 [#allocation12], 4
      %s87 = int_to_ptr.vmem [resolvable:$true] %s86
      %92 = dma.hbm_to_vmem [thread:$0]  %s5, 1024, %s87, [#allocation13], 128, 128, 8
    $region25: #{tpu_custom_call.1} parent=1 // pred_fallthru
      _
    // Predicated region
    $region26: #{tpu_custom_call.1} parent=1 // pred_check
      _
    $region27: #{tpu_custom_call.1} parent=1 // pred_check_branch
      %94 = sbr.rel (0) target = $region29
    $region28: #{tpu_custom_call.1} parent=1 // pred_region
      %s96 = ssub.s32 1792, 1792
      %97 = vsyncadd [#allocation13], %s96
      %s98 = sshll.u32 [#allocation14], 4
      %s99 = int_to_ptr.vmem [resolvable:$true] %s98
      %104 = dma.hbm_to_vmem [thread:$0]  %s6, 1792, %s99, [#allocation13], 128, 128, 8
    $region29: #{tpu_custom_call.1} parent=1 // pred_fallthru
      _
    // Predicated region
    $region30: #{tpu_custom_call.1} parent=1 // pred_check
      _
    $region31: #{tpu_custom_call.1} parent=1 // pred_check_branch
      %106 = sbr.rel (0) target = $region33
    $region32: #{tpu_custom_call.1} parent=1 // pred_region
      _
    $region33: #{tpu_custom_call.1} parent=1 // pred_fallthru
      _
    // Predicated region
    $region34: #{tpu_custom_call.1} parent=1 // pred_check
      _
    $region35: #{tpu_custom_call.1} parent=1 // pred_check_branch
      %108 = sbr.rel (0) target = $region37
    $region36: #{tpu_custom_call.1} parent=1 // pred_region
      _
    $region37: #{tpu_custom_call.1} parent=1 // pred_fallthru
      _
    // Predicated region
    $region38: #{tpu_custom_call.1} parent=1 // pred_check
      _
    $region39: #{tpu_custom_call.1} parent=1 // pred_check_branch
      %110 = sbr.rel (0) target = $region41
    $region40: #{tpu_custom_call.1} parent=1 // pred_region
      _
    $region41: #{tpu_custom_call.1} parent=1 // pred_fallthru
      _
    // Predicated region
    $region42: #{tpu_custom_call.1} parent=1 // pred_check
      _
    $region43: #{tpu_custom_call.1} parent=1 // pred_check_branch
      %112 = sbr.rel (0) target = $region45
    $region44: #{tpu_custom_call.1} parent=1 // pred_region
      _
    $region45: #{tpu_custom_call.1} parent=1 // pred_fallthru
      _
    // Predicated region
    $region46: #{tpu_custom_call.1} parent=1 // pred_check
      _
    $region47: #{tpu_custom_call.1} parent=1 // pred_check_branch
      %114 = sbr.rel (0) target = $region49
    $region48: #{tpu_custom_call.1} parent=1 // pred_region
      _
    $region49: #{tpu_custom_call.1} parent=1 // pred_fallthru
      _
    // Predicated region
    $region50: #{tpu_custom_call.1} parent=1 // pred_check
      _
    $region51: #{tpu_custom_call.1} parent=1 // pred_check_branch
      %116 = sbr.rel (0) target = $region53
    $region52: #{tpu_custom_call.1} parent=1 // pred_region
      _
    $region53: #{tpu_custom_call.1} parent=1 // pred_fallthru
      _
    // Predicated region
    $region54: #{tpu_custom_call.1} parent=1 // pred_check
      _
    $region55: #{tpu_custom_call.1} parent=1 // pred_check_branch
      %118 = sbr.rel (0) target = $region57
    $region56: #{tpu_custom_call.1} parent=1 // pred_region
      _
    $region57: #{tpu_custom_call.1} parent=1 // pred_fallthru
      _
    // Predicated region
    $region58: #{tpu_custom_call.1} parent=1 // pred_check
      _
    $region59: #{tpu_custom_call.1} parent=1 // pred_check_branch
      %120 = sbr.rel (0) target = $region61
    $region60: #{tpu_custom_call.1} parent=1 // pred_region
      %121 = dma.done [#allocation4], 128
    $region61: #{tpu_custom_call.1} parent=1 // pred_fallthru
      _
    // Predicated region
    $region62: #{tpu_custom_call.1} parent=1 // pred_check
      _
    $region63: #{tpu_custom_call.1} parent=1 // pred_check_branch
      %123 = sbr.rel (0) target = $region65
    $region64: #{tpu_custom_call.1} parent=1 // pred_region
      %124 = dma.done [#allocation7], 128
    $region65: #{tpu_custom_call.1} parent=1 // pred_fallthru
      _
    // Predicated region
    $region66: #{tpu_custom_call.1} parent=1 // pred_check
      _
    $region67: #{tpu_custom_call.1} parent=1 // pred_check_branch
      %126 = sbr.rel (0) target = $region69
    $region68: #{tpu_custom_call.1} parent=1 // pred_region
      %127 = dma.done [#allocation7], 256
    $region69: #{tpu_custom_call.1} parent=1 // pred_fallthru
      _
    // Predicated region
    $region70: #{tpu_custom_call.1} parent=1 // pred_check
      _
    $region71: #{tpu_custom_call.1} parent=1 // pred_check_branch
      %129 = sbr.rel (0) target = $region73
    $region72: #{tpu_custom_call.1} parent=1 // pred_region
      %130 = dma.done [#allocation10], 256
    $region73: #{tpu_custom_call.1} parent=1 // pred_fallthru
      _
    // Predicated region
    $region74: #{tpu_custom_call.1} parent=1 // pred_check
      _
    $region75: #{tpu_custom_call.1} parent=1 // pred_check_branch
      %132 = sbr.rel (0) target = $region77
    $region76: #{tpu_custom_call.1} parent=1 // pred_region
      %133 = dma.done [#allocation10], 1024
    $region77: #{tpu_custom_call.1} parent=1 // pred_fallthru
      _
    // Predicated region
    $region78: #{tpu_custom_call.1} parent=1 // pred_check
      _
    $region79: #{tpu_custom_call.1} parent=1 // pred_check_branch
      %135 = sbr.rel (0) target = $region81
    $region80: #{tpu_custom_call.1} parent=1 // pred_region
      %136 = dma.done [#allocation13], 1024
    $region81: #{tpu_custom_call.1} parent=1 // pred_fallthru
      _
    // Predicated region
    $region82: #{tpu_custom_call.1} parent=1 // pred_check
      _
    $region83: #{tpu_custom_call.1} parent=1 // pred_check_branch
      %138 = sbr.rel (0) target = $region85
    $region84: #{tpu_custom_call.1} parent=1 // pred_region
      %139 = dma.done [#allocation13], 1792
    $region85: #{tpu_custom_call.1} parent=1 // pred_fallthru
      _
    %v140 = vld [vmem:[#allocation8] sm:$0xff]
    %s141 = scalar_lea.vmem [#allocation8], 8
    %v142 = vld [vmem:[%s141] sm:$0xff]
    %v143 = vld [vmem:[#allocation9] sm:$0xff]
    %s144 = scalar_lea.vmem [#allocation9], 8
    %v145 = vld [vmem:[%s144] sm:$0xff]
    %v146 = vld [vmem:[#allocation6] sm:$0xff]
    %v147 = vld [vmem:[#allocation3] sm:$0xff]
    %149 = vrot.lane.b32.xlu0 %v146, 32
    %v150 = vpop.permute.xlu0 %149
    %153 = vrot.lane.b32.xlu0 %v147, 64
    %v154 = vpop.permute.xlu0 %153
    %157 = vrot.lane.b32.xlu0 %v140, 80
    %v158 = vpop.permute.xlu0 %157
    %vm160 = vcmask 261120
    %v161 = vsel %vm160, %v142, %v150
    %vm162 = vcmask 523264
    %v163 = vsel %vm162, %v161, %v154
    %vm164 = vcmask 654336
    %v165 = vsel %vm164, %v163, %v158
    %v166 = vld [vmem:[#allocation14] sm:$0xff]
    %v167 = vld [vmem:[#allocation14 + $0x8] sm:$0xff]
    %v168 = vld [vmem:[#allocation14 + $0x10] sm:$0xff]
    %v169 = vld [vmem:[#allocation14 + $0x18] sm:$0xff]
    %v170 = vld [vmem:[#allocation14 + $0x20] sm:$0xff]
    %v171 = vld [vmem:[#allocation14 + $0x28] sm:$0xff]
    %v172 = vld [vmem:[#allocation14 + $0x30] sm:$0xff]
    %v173 = vld [vmem:[#allocation14 + $0x38] sm:$0xff]
    %v174 = vld [vmem:[#allocation14 + $0x40] sm:$0xff]
    %v175 = vld [vmem:[#allocation14 + $0x48] sm:$0xff]
    %v176 = vld [vmem:[#allocation14 + $0x50] sm:$0xff]
    %v177 = vld [vmem:[#allocation14 + $0x58] sm:$0xff]
    %v178 = vld [vmem:[#allocation14 + $0x60] sm:$0xff]
    %v179 = vld [vmem:[#allocation14 + $0x68] sm:$0xff]
    %v180 = vld [vmem:[%s7] sm:$0x1]
    %v182 = vlaneseq
    %v183 = vshrl.u32 %v182, 7
    %v184 = vsub.s32 0, %v183
    %v185 = vrot.slane %v180, %v184
    %vm187 = vcmask 916480
    %v189 = vsel %vm187, %v165, 0
    %191 = vmatprep.subr.mxu0 0.0
    %192 = vmatpush1.msra.mxu0 %v166
    %193 = vmatprep.subr.mxu0 0.0
    %194 = vmatpush1.msra.mxu0 %v167
    %195 = vmatprep.subr.mxu0 0.0
    %196 = vmatpush1.msra.mxu0 %v168
    %197 = vmatprep.subr.mxu0 0.0
    %198 = vmatpush1.msra.mxu0 %v169
    %199 = vmatprep.subr.mxu0 0.0
    %200 = vmatpush1.msra.mxu0 %v170
    %201 = vmatprep.subr.mxu0 0.0
    %202 = vmatpush1.msra.mxu0 %v171
    %203 = vmatprep.subr.mxu0 0.0
    %204 = vmatpush1.msra.mxu0 %v172
    %205 = vmatprep.subr.mxu0 0.0
    %206 = vmatpush1.msra.mxu0 %v173
    %207 = vmatprep.subr.mxu0 0.0
    %208 = vmatpush1.msra.mxu0 %v174
    %209 = vmatprep.subr.mxu0 0.0
    %210 = vmatpush1.msra.mxu0 %v175
    %211 = vmatprep.subr.mxu0 0.0
    %212 = vmatpush1.msra.mxu0 %v176
    %213 = vmatprep.subr.mxu0 0.0
    %214 = vmatpush1.msra.mxu0 %v177
    %215 = vmatprep.subr.mxu0 0.0
    %216 = vmatpush1.msra.mxu0 %v178
    %217 = vmatprep.subr.mxu0 0.0
    %218 = vmatpush1.msra.mxu0 %v179
    %219 = vmatprep.subr.mxu0 0.0
    %220 = vmatpush1.msra.mxu0 0.0
    %221 = vmatprep.subr.mxu0 0.0
    %222 = vmatpush1.msra.mxu0 0.0
    %223 = vmatprep.subr.mxu0 0.0
    %224 = vmatpush1.msra.mxu0 0.0
    %225 = vmatprep.subr.mxu0 0.0
    %226 = vmatpush1.msra.mxu0 0.0
    %227 = vmatprep.subr.mxu0 0.0
    %228 = vmatpush1.msra.mxu0 0.0
    %229 = vmatprep.subr.mxu0 0.0
    %230 = vmatpush1.msra.mxu0 0.0
    %231 = vmatprep.subr.mxu0 0.0
    %232 = vmatpush1.msra.mxu0 0.0
    %233 = vmatprep.subr.mxu0 0.0
    %234 = vmatpush1.msra.mxu0 0.0
    %235 = vmatprep.subr.mxu0 0.0
    %236 = vmatpush1.msra.mxu0 0.0
    %237 = vmatprep.subr.mxu0 0.0
    %238 = vmatpush1.msra.mxu0 0.0
    %239 = vmatprep.subr.mxu0 0.0
    %240 = vmatpush1.msra.mxu0 0.0
    %241 = vmatprep.subr.mxu0 0.0
    %242 = vmatpush1.msra.mxu0 0.0
    %243 = vmatprep.subr.mxu0 0.0
    %244 = vmatpush1.msra.mxu0 0.0
    %245 = vmatprep.subr.mxu0 0.0
    %246 = vmatpush1.msra.mxu0 0.0
    %247 = vmatprep.subr.mxu0 0.0
    %248 = vmatpush1.msra.mxu0 0.0
    %249 = vmatprep.subr.mxu0 0.0
    %250 = vmatpush1.msra.mxu0 0.0
    %251 = vmatprep.subr.mxu0 0.0
    %252 = vmatpush1.msra.mxu0 0.0
    %253 = vmatprep.subr.mxu0 0.0
    %254 = vmatpush1.msra.mxu0 0.0
    %255 = vmatprep.mubr.f32.mxu0 0.0
    %256 = vmatmul.mubr.f32.gmra.mrb[0].mxu0 %v189
    %v257 = vpop.f32.mrb[0].mxu0
    %v258 = vadd.f32 %v185, %v257
    %v259 = vpop.f32.mrb[0].mxu0
    %260 = vdwg.mxu0
    %v261 = vxor.u32 %v258, 2147483648
    %v262 = vmul.f32 %v261, 1.442695
    %v263 = vpow.pop %v262
    %v264 = vadd.f32 %v263, 1.0
    %v265 = vrcp.pop %v264
    %v266 = vmul.f32 1.0, %v265
    %v267 = vtanh.pop %v258
    %269 = vrot.lane.b32.xlu0 %v143, 32
    %v270 = vpop.permute.xlu0 %269
    %v272 = vmul.f32 %v266, %v270
    %274 = vrot.lane.b32.xlu0 %v267, 64
    %v275 = vpop.permute.xlu0 %274
    %v277 = vmul.f32 %v266, %v275
    %279 = vrot.lane.b32.xlu0 %v277, 32
    %v280 = vpop.permute.xlu0 %279
    %v282 = vadd.f32 %v272, %v280
    %v283 = vtanh.pop %v282
    %285 = vrot.lane.b32.xlu0 %v283, 64
    %v286 = vpop.permute.xlu0 %285
    %v288 = vmul.f32 %v266, %v286
    %v289 = vld [vmem:[%s10] sm:$0xff]
    %v290 = vld [vmem:[%s10 + $0x8] sm:$0xff]
    %v291 = vld [vmem:[%s10 + $0x10] sm:$0xff]
    %v292 = vld [vmem:[%s10 + $0x18] sm:$0xff]
    %v293 = vld [vmem:[%s11] sm:$0x1]
    %v295 = vlaneseq
    %v296 = vshrl.u32 %v295, 7
    %v297 = vsub.s32 0, %v296
    %v298 = vrot.slane %v293, %v297
    %301 = vrot.lane.b32.xlu0 %v288, 32
    %v302 = vpop.permute.xlu0 %301
    %v303 = vsel %vm160, %v302, 0
    %305 = vmatprep.subr.mxu0 0.0
    %306 = vmatpush1.msra.mxu0 %v289
    %307 = vmatprep.subr.mxu0 0.0
    %308 = vmatpush1.msra.mxu0 %v290
    %309 = vmatprep.subr.mxu0 0.0
    %310 = vmatpush1.msra.mxu0 %v291
    %311 = vmatprep.subr.mxu0 0.0
    %312 = vmatpush1.msra.mxu0 %v292
    %313 = vmatprep.subr.mxu0 0.0
    %314 = vmatpush1.msra.mxu0 0.0
    %315 = vmatprep.subr.mxu0 0.0
    %316 = vmatpush1.msra.mxu0 0.0
    %317 = vmatprep.subr.mxu0 0.0
    %318 = vmatpush1.msra.mxu0 0.0
    %319 = vmatprep.subr.mxu0 0.0
    %320 = vmatpush1.msra.mxu0 0.0
    %321 = vmatprep.subr.mxu0 0.0
    %322 = vmatpush1.msra.mxu0 0.0
    %323 = vmatprep.subr.mxu0 0.0
    %324 = vmatpush1.msra.mxu0 0.0
    %325 = vmatprep.subr.mxu0 0.0
    %326 = vmatpush1.msra.mxu0 0.0
    %327 = vmatprep.subr.mxu0 0.0
    %328 = vmatpush1.msra.mxu0 0.0
    %329 = vmatprep.subr.mxu0 0.0
    %330 = vmatpush1.msra.mxu0 0.0
    %331 = vmatprep.subr.mxu0 0.0
    %332 = vmatpush1.msra.mxu0 0.0
    %333 = vmatprep.subr.mxu0 0.0
    %334 = vmatpush1.msra.mxu0 0.0
    %335 = vmatprep.subr.mxu0 0.0
    %336 = vmatpush1.msra.mxu0 0.0
    %337 = vmatprep.subr.mxu0 0.0
    %338 = vmatpush1.msra.mxu0 0.0
    %339 = vmatprep.subr.mxu0 0.0
    %340 = vmatpush1.msra.mxu0 0.0
    %341 = vmatprep.subr.mxu0 0.0
    %342 = vmatpush1.msra.mxu0 0.0
    %343 = vmatprep.subr.mxu0 0.0
    %344 = vmatpush1.msra.mxu0 0.0
    %345 = vmatprep.subr.mxu0 0.0
    %346 = vmatpush1.msra.mxu0 0.0
    %347 = vmatprep.subr.mxu0 0.0
    %348 = vmatpush1.msra.mxu0 0.0
    %349 = vmatprep.subr.mxu0 0.0
    %350 = vmatpush1.msra.mxu0 0.0
    %351 = vmatprep.subr.mxu0 0.0
    %352 = vmatpush1.msra.mxu0 0.0
    %353 = vmatprep.subr.mxu0 0.0
    %354 = vmatpush1.msra.mxu0 0.0
    %355 = vmatprep.subr.mxu0 0.0
    %356 = vmatpush1.msra.mxu0 0.0
    %357 = vmatprep.subr.mxu0 0.0
    %358 = vmatpush1.msra.mxu0 0.0
    %359 = vmatprep.subr.mxu0 0.0
    %360 = vmatpush1.msra.mxu0 0.0
    %361 = vmatprep.subr.mxu0 0.0
    %362 = vmatpush1.msra.mxu0 0.0
    %363 = vmatprep.subr.mxu0 0.0
    %364 = vmatpush1.msra.mxu0 0.0
    %365 = vmatprep.subr.mxu0 0.0
    %366 = vmatpush1.msra.mxu0 0.0
    %367 = vmatprep.subr.mxu0 0.0
    %368 = vmatpush1.msra.mxu0 0.0
    %369 = vmatprep.mubr.f32.mxu0 0.0
    %370 = vmatmul.mubr.f32.gmra.mrb[0].mxu0 %v303
    %v371 = vpop.f32.mrb[0].mxu0
    %v372 = vadd.f32 %v298, %v371
    %v373 = vpop.f32.mrb[0].mxu0
    %374 = vdwg.mxu0
    %v375 = vld [vmem:[#allocation11] sm:$0xff]
    %v376 = vld [vmem:[#allocation11 + $0x8] sm:$0xff]
    %v377 = vld [vmem:[#allocation11 + $0x10] sm:$0xff]
    %v378 = vld [vmem:[#allocation11 + $0x18] sm:$0xff]
    %v379 = vld [vmem:[#allocation11 + $0x20] sm:$0xff]
    %v380 = vld [vmem:[#allocation11 + $0x28] sm:$0xff]
    %v381 = vld [vmem:[#allocation11 + $0x30] sm:$0xff]
    %v382 = vld [vmem:[#allocation11 + $0x38] sm:$0xff]
    %v384 = vcombine.high %v372, %v372
    %v386 = vunpack.c.l.s4 1966171168
    %v387 = vunpack.c.0.s8 %v386
    %v388 = vlaneseq
    %v389 = vshrl.u32 %v388, 7
    %v390 = vsub.s32 %v387, %v389
    %v391 = vrot.slane %v372, %v390
    %v393 = vunpack.c.l.s4 1966171168
    %v394 = vunpack.c.0.s8 %v393
    %v395 = vlaneseq
    %v396 = vshrl.u32 %v395, 7
    %v397 = vsub.s32 %v394, %v396
    %v398 = vrot.slane %v384, %v397
    %v399 = vcombine.high %v391, %v391
    %v400 = vcombine.high %v398, %v398
    %v402 = vunpack.c.l.s4 1966171168
    %v403 = vunpack.c.0.s8 %v402
    %v404 = vlaneseq
    %v405 = vshrl.u32 %v404, 7
    %v406 = vsub.s32 %v403, %v405
    %v407 = vrot.slane %v391, %v406
    %v409 = vunpack.c.l.s4 1966171168
    %v410 = vunpack.c.0.s8 %v409
    %v411 = vlaneseq
    %v412 = vshrl.u32 %v411, 7
    %v413 = vsub.s32 %v410, %v412
    %v414 = vrot.slane %v398, %v413
    %v416 = vunpack.c.l.s4 1966171168
    %v417 = vunpack.c.0.s8 %v416
    %v418 = vlaneseq
    %v419 = vshrl.u32 %v418, 7
    %v420 = vsub.s32 %v417, %v419
    %v421 = vrot.slane %v399, %v420
    %v423 = vunpack.c.l.s4 1966171168
    %v424 = vunpack.c.0.s8 %v423
    %v425 = vlaneseq
    %v426 = vshrl.u32 %v425, 7
    %v427 = vsub.s32 %v424, %v426
    %v428 = vrot.slane %v400, %v427
    %v429 = vcombine.high %v407, %v407
    %v430 = vcombine.high %v414, %v414
    %v431 = vcombine.high %v421, %v421
    %v432 = vcombine.high %v428, %v428
    %v433 = vlaneseq
    %v434 = vshrl.u32 %v433, 7
    %v435 = vsub.s32 0, %v434
    %v436 = vrot.slane %v407, %v435
    %v437 = vlaneseq
    %v438 = vshrl.u32 %v437, 7
    %v439 = vsub.s32 0, %v438
    %v440 = vrot.slane %v421, %v439
    %v441 = vlaneseq
    %v442 = vshrl.u32 %v441, 7
    %v443 = vsub.s32 0, %v442
    %v444 = vrot.slane %v429, %v443
    %v445 = vlaneseq
    %v446 = vshrl.u32 %v445, 7
    %v447 = vsub.s32 0, %v446
    %v448 = vrot.slane %v431, %v447
    %v449 = vlaneseq
    %v450 = vshrl.u32 %v449, 7
    %v451 = vsub.s32 0, %v450
    %v452 = vrot.slane %v414, %v451
    %v453 = vlaneseq
    %v454 = vshrl.u32 %v453, 7
    %v455 = vsub.s32 0, %v454
    %v456 = vrot.slane %v428, %v455
    %v457 = vlaneseq
    %v458 = vshrl.u32 %v457, 7
    %v459 = vsub.s32 0, %v458
    %v460 = vrot.slane %v430, %v459
    %v461 = vlaneseq
    %v462 = vshrl.u32 %v461, 7
    %v463 = vsub.s32 0, %v462
    %v464 = vrot.slane %v432, %v463
    %v473 = vadd.f32 %v375, %v436
    %v474 = vadd.f32 %v376, %v440
    %v475 = vadd.f32 %v377, %v444
    %v476 = vadd.f32 %v378, %v448
    %v477 = vadd.f32 %v379, %v452
    %v478 = vadd.f32 %v380, %v456
    %v479 = vadd.f32 %v381, %v460
    %v480 = vadd.f32 %v382, %v464
    %v481 = vtanh.pop %v473
    %v482 = vtanh.pop %v474
    %v483 = vtanh.pop %v475
    %v484 = vtanh.pop %v476
    %v485 = vtanh.pop %v477
    %v486 = vtanh.pop %v478
    %v487 = vtanh.pop %v479
    %v488 = vtanh.pop %v480
    %v489 = vld [vmem:[%s12] sm:$0xff]
    %v490 = vld [vmem:[%s12 + $0x8] sm:$0xff]
    %v491 = vld [vmem:[%s12 + $0x10] sm:$0xff]
    %vm492 = vcmask 195584
    %v494 = vsel %vm492, %v481, 0
    %v497 = vsel %vm492, %v482, 0
    %v500 = vsel %vm492, %v483, 0
    %v503 = vsel %vm492, %v484, 0
    %v506 = vsel %vm492, %v485, 0
    %v509 = vsel %vm492, %v486, 0
    %v512 = vsel %vm492, %v487, 0
    %v515 = vsel %vm492, %v488, 0
    %517 = vmatprep.subr.mxu0 0.0
    %518 = vmatpush1.msra.mxu0 %v489
    %519 = vmatprep.subr.mxu0 0.0
    %520 = vmatpush1.msra.mxu0 %v490
    %521 = vmatprep.subr.mxu0 0.0
    %522 = vmatpush1.msra.mxu0 %v491
    %523 = vmatprep.subr.mxu0 0.0
    %524 = vmatpush1.msra.mxu0 0.0
    %525 = vmatprep.subr.mxu0 0.0
    %526 = vmatpush1.msra.mxu0 0.0
    %527 = vmatprep.subr.mxu0 0.0
    %528 = vmatpush1.msra.mxu0 0.0
    %529 = vmatprep.subr.mxu0 0.0
    %530 = vmatpush1.msra.mxu0 0.0
    %531 = vmatprep.subr.mxu0 0.0
    %532 = vmatpush1.msra.mxu0 0.0
    %533 = vmatprep.subr.mxu0 0.0
    %534 = vmatpush1.msra.mxu0 0.0
    %535 = vmatprep.subr.mxu0 0.0
    %536 = vmatpush1.msra.mxu0 0.0
    %537 = vmatprep.subr.mxu0 0.0
    %538 = vmatpush1.msra.mxu0 0.0
    %539 = vmatprep.subr.mxu0 0.0
    %540 = vmatpush1.msra.mxu0 0.0
    %541 = vmatprep.subr.mxu0 0.0
    %542 = vmatpush1.msra.mxu0 0.0
    %543 = vmatprep.subr.mxu0 0.0
    %544 = vmatpush1.msra.mxu0 0.0
    %545 = vmatprep.subr.mxu0 0.0
    %546 = vmatpush1.msra.mxu0 0.0
    %547 = vmatprep.subr.mxu0 0.0
    %548 = vmatpush1.msra.mxu0 0.0
    %549 = vmatprep.subr.mxu0 0.0
    %550 = vmatpush1.msra.mxu0 0.0
    %551 = vmatprep.subr.mxu0 0.0
    %552 = vmatpush1.msra.mxu0 0.0
    %553 = vmatprep.subr.mxu0 0.0
    %554 = vmatpush1.msra.mxu0 0.0
    %555 = vmatprep.subr.mxu0 0.0
    %556 = vmatpush1.msra.mxu0 0.0
    %557 = vmatprep.subr.mxu0 0.0
    %558 = vmatpush1.msra.mxu0 0.0
    %559 = vmatprep.subr.mxu0 0.0
    %560 = vmatpush1.msra.mxu0 0.0
    %561 = vmatprep.subr.mxu0 0.0
    %562 = vmatpush1.msra.mxu0 0.0
    %563 = vmatprep.subr.mxu0 0.0
    %564 = vmatpush1.msra.mxu0 0.0
    %565 = vmatprep.subr.mxu0 0.0
    %566 = vmatpush1.msra.mxu0 0.0
    %567 = vmatprep.subr.mxu0 0.0
    %568 = vmatpush1.msra.mxu0 0.0
    %569 = vmatprep.subr.mxu0 0.0
    %570 = vmatpush1.msra.mxu0 0.0
    %571 = vmatprep.subr.mxu0 0.0
    %572 = vmatpush1.msra.mxu0 0.0
    %573 = vmatprep.subr.mxu0 0.0
    %574 = vmatpush1.msra.mxu0 0.0
    %575 = vmatprep.subr.mxu0 0.0
    %576 = vmatpush1.msra.mxu0 0.0
    %577 = vmatprep.subr.mxu0 0.0
    %578 = vmatpush1.msra.mxu0 0.0
    %579 = vmatprep.subr.mxu0 0.0
    %580 = vmatpush1.msra.mxu0 0.0
    %581 = vmatprep.mubr.f32.mxu0 0.0
    %582 = vmatmul.mubr.f32.gmra.mrb[0].mxu0 %v494
    %v583 = vpop.f32.mrb[0].mxu0
    %v584 = vadd.f32 0.0, %v583
    %v585 = vpop.f32.mrb[0].mxu0
    %586 = vmatprep.mubr.f32.mxu0 0.0
    %587 = vmatmul.mubr.f32.gmra.mrb[0].mxu0 %v497
    %v588 = vpop.f32.mrb[0].mxu0
    %v589 = vadd.f32 0.0, %v588
    %v590 = vpop.f32.mrb[0].mxu0
    %591 = vmatprep.mubr.f32.mxu0 0.0
    %592 = vmatmul.mubr.f32.gmra.mrb[0].mxu0 %v500
    %v593 = vpop.f32.mrb[0].mxu0
    %v594 = vadd.f32 0.0, %v593
    %v595 = vpop.f32.mrb[0].mxu0
    %596 = vmatprep.mubr.f32.mxu0 0.0
    %597 = vmatmul.mubr.f32.gmra.mrb[0].mxu0 %v503
    %v598 = vpop.f32.mrb[0].mxu0
    %v599 = vadd.f32 0.0, %v598
    %v600 = vpop.f32.mrb[0].mxu0
    %601 = vmatprep.mubr.f32.mxu0 0.0
    %602 = vmatmul.mubr.f32.gmra.mrb[0].mxu0 %v506
    %v603 = vpop.f32.mrb[0].mxu0
    %v604 = vadd.f32 0.0, %v603
    %v605 = vpop.f32.mrb[0].mxu0
    %606 = vmatprep.mubr.f32.mxu0 0.0
    %607 = vmatmul.mubr.f32.gmra.mrb[0].mxu0 %v509
    %v608 = vpop.f32.mrb[0].mxu0
    %v609 = vadd.f32 0.0, %v608
    %v610 = vpop.f32.mrb[0].mxu0
    %611 = vmatprep.mubr.f32.mxu0 0.0
    %612 = vmatmul.mubr.f32.gmra.mrb[0].mxu0 %v512
    %v613 = vpop.f32.mrb[0].mxu0
    %v614 = vadd.f32 0.0, %v613
    %v615 = vpop.f32.mrb[0].mxu0
    %616 = vmatprep.mubr.f32.mxu0 0.0
    %617 = vmatmul.mubr.f32.gmra.mrb[0].mxu0 %v515
    %v618 = vpop.f32.mrb[0].mxu0
    %v619 = vadd.f32 0.0, %v618
    %v620 = vpop.f32.mrb[0].mxu0
    %621 = vdwg.mxu0
    %s622 = sld [smem:[#allocation2]]
    %v623 = vstv %s622
    %v624 = vadd.f32 %v584, %v623
    %v625 = vadd.f32 %v589, %v623
    %v626 = vadd.f32 %v594, %v623
    %v627 = vadd.f32 %v599, %v623
    %v628 = vadd.f32 %v604, %v623
    %v629 = vadd.f32 %v609, %v623
    %v630 = vadd.f32 %v614, %v623
    %v631 = vadd.f32 %v619, %v623
    %640 = vset.pattern.permute.xlu0 0
    %641 = vperm.xlu0 %640, %v624
    %v642 = vpop.permute.xlu0 %641
    %643 = vset.pattern.permute.xlu0 0
    %644 = vperm.xlu0 %643, %v625
    %v645 = vpop.permute.xlu0 %644
    %646 = vset.pattern.permute.xlu0 0
    %647 = vperm.xlu0 %646, %v626
    %v648 = vpop.permute.xlu0 %647
    %649 = vset.pattern.permute.xlu0 0
    %650 = vperm.xlu0 %649, %v627
    %v651 = vpop.permute.xlu0 %650
    %652 = vset.pattern.permute.xlu0 0
    %653 = vperm.xlu0 %652, %v628
    %v654 = vpop.permute.xlu0 %653
    %655 = vset.pattern.permute.xlu0 0
    %656 = vperm.xlu0 %655, %v629
    %v657 = vpop.permute.xlu0 %656
    %658 = vset.pattern.permute.xlu0 0
    %659 = vperm.xlu0 %658, %v630
    %v660 = vpop.permute.xlu0 %659
    %661 = vset.pattern.permute.xlu0 0
    %662 = vperm.xlu0 %661, %v631
    %v663 = vpop.permute.xlu0 %662
    %v664 = vlaneseq
    %v665 = vand.u32 %v664, 127
    %v666 = vlaneseq
    %v667 = vshrl.u32 %v666, 7
    %v668 = vsub.s32 %v665, %v667
    %v669 = vrot.slane %v642, %v668
    %v670 = vlaneseq
    %v671 = vshrl.u32 %v670, 7
    %v672 = vsub.s32 %v665, %v671
    %v673 = vrot.slane %v645, %v672
    %v674 = vlaneseq
    %v675 = vshrl.u32 %v674, 7
    %v676 = vsub.s32 %v665, %v675
    %v677 = vrot.slane %v648, %v676
    %v678 = vlaneseq
    %v679 = vshrl.u32 %v678, 7
    %v680 = vsub.s32 %v665, %v679
    %v681 = vrot.slane %v651, %v680
    %v682 = vlaneseq
    %v683 = vshrl.u32 %v682, 7
    %v684 = vsub.s32 %v665, %v683
    %v685 = vrot.slane %v654, %v684
    %v686 = vlaneseq
    %v687 = vshrl.u32 %v686, 7
    %v688 = vsub.s32 %v665, %v687
    %v689 = vrot.slane %v657, %v688
    %v690 = vlaneseq
    %v691 = vshrl.u32 %v690, 7
    %v692 = vsub.s32 %v665, %v691
    %v693 = vrot.slane %v660, %v692
    %v694 = vlaneseq
    %v695 = vshrl.u32 %v694, 7
    %v696 = vsub.s32 %v665, %v695
    %v697 = vrot.slane %v663, %v696
    %vm698 = vcmask 1041409
    %v699 = vsel %vm698, %v673, %v669
    %vm700 = vcmask 1042434
    %v701 = vsel %vm700, %v677, %v699
    %vm702 = vcmask 1043459
    %v703 = vsel %vm702, %v681, %v701
    %vm704 = vcmask 1044484
    %v705 = vsel %vm704, %v685, %v703
    %vm706 = vcmask 1045509
    %v707 = vsel %vm706, %v689, %v705
    %vm708 = vcmask 1046534
    %v709 = vsel %vm708, %v693, %v707
    %vm710 = vcmask 1047559
    %v711 = vsel %vm710, %v697, %v709
    %vm713 = vcmask 64512
    %v714 = vsel %vm713, %v711, -inf
    %715 = vmax.xlane.f32.xlu0 %v714
    %v716 = vpop.xlane.xlu0 %715
    %v718 = vlaneseq
    %v719 = vshrl.u32 %v718, 7
    %v720 = vsub.s32 0, %v719
    %v721 = vrot.slane %v716, %v720
    %v722 = vlaneseq
    %v723 = vshrl.u32 %v722, 7
    %v724 = vsub.s32 1, %v723
    %v725 = vrot.slane %v716, %v724
    %v726 = vlaneseq
    %v727 = vshrl.u32 %v726, 7
    %v728 = vsub.s32 2, %v727
    %v729 = vrot.slane %v716, %v728
    %v730 = vlaneseq
    %v731 = vshrl.u32 %v730, 7
    %v732 = vsub.s32 3, %v731
    %v733 = vrot.slane %v716, %v732
    %v734 = vlaneseq
    %v735 = vshrl.u32 %v734, 7
    %v736 = vsub.s32 4, %v735
    %v737 = vrot.slane %v716, %v736
    %v738 = vlaneseq
    %v739 = vshrl.u32 %v738, 7
    %v740 = vsub.s32 5, %v739
    %v741 = vrot.slane %v716, %v740
    %v742 = vlaneseq
    %v743 = vshrl.u32 %v742, 7
    %v744 = vsub.s32 6, %v743
    %v745 = vrot.slane %v716, %v744
    %v746 = vlaneseq
    %v747 = vshrl.u32 %v746, 7
    %v748 = vsub.s32 7, %v747
    %v749 = vrot.slane %v716, %v748
    %v758 = vsub.f32 %v624, %v721
    %v759 = vsub.f32 %v625, %v725
    %v760 = vsub.f32 %v626, %v729
    %v761 = vsub.f32 %v627, %v733
    %v762 = vsub.f32 %v628, %v737
    %v763 = vsub.f32 %v629, %v741
    %v764 = vsub.f32 %v630, %v745
    %v765 = vsub.f32 %v631, %v749
    %v766 = vmul.f32 %v758, 1.442695
    %v767 = vpow.pop %v766
    %v768 = vmul.f32 %v759, 1.442695
    %v769 = vpow.pop %v768
    %v770 = vmul.f32 %v760, 1.442695
    %v771 = vpow.pop %v770
    %v772 = vmul.f32 %v761, 1.442695
    %v773 = vpow.pop %v772
    %v774 = vmul.f32 %v762, 1.442695
    %v775 = vpow.pop %v774
    %v776 = vmul.f32 %v763, 1.442695
    %v777 = vpow.pop %v776
    %v778 = vmul.f32 %v764, 1.442695
    %v779 = vpow.pop %v778
    %v780 = vmul.f32 %v765, 1.442695
    %v781 = vpow.pop %v780
    %790 = vset.pattern.permute.xlu0 0
    %791 = vperm.xlu0 %790, %v767
    %v792 = vpop.permute.xlu0 %791
    %793 = vset.pattern.permute.xlu0 0
    %794 = vperm.xlu0 %793, %v769
    %v795 = vpop.permute.xlu0 %794
    %796 = vset.pattern.permute.xlu0 0
    %797 = vperm.xlu0 %796, %v771
    %v798 = vpop.permute.xlu0 %797
    %799 = vset.pattern.permute.xlu0 0
    %800 = vperm.xlu0 %799, %v773
    %v801 = vpop.permute.xlu0 %800
    %802 = vset.pattern.permute.xlu0 0
    %803 = vperm.xlu0 %802, %v775
    %v804 = vpop.permute.xlu0 %803
    %805 = vset.pattern.permute.xlu0 0
    %806 = vperm.xlu0 %805, %v777
    %v807 = vpop.permute.xlu0 %806
    %808 = vset.pattern.permute.xlu0 0
    %809 = vperm.xlu0 %808, %v779
    %v810 = vpop.permute.xlu0 %809
    %811 = vset.pattern.permute.xlu0 0
    %812 = vperm.xlu0 %811, %v781
    %v813 = vpop.permute.xlu0 %812
    %v814 = vlaneseq
    %v815 = vshrl.u32 %v814, 7
    %v816 = vsub.s32 %v665, %v815
    %v817 = vrot.slane %v792, %v816
    %v818 = vlaneseq
    %v819 = vshrl.u32 %v818, 7
    %v820 = vsub.s32 %v665, %v819
    %v821 = vrot.slane %v795, %v820
    %v822 = vlaneseq
    %v823 = vshrl.u32 %v822, 7
    %v824 = vsub.s32 %v665, %v823
    %v825 = vrot.slane %v798, %v824
    %v826 = vlaneseq
    %v827 = vshrl.u32 %v826, 7
    %v828 = vsub.s32 %v665, %v827
    %v829 = vrot.slane %v801, %v828
    %v830 = vlaneseq
    %v831 = vshrl.u32 %v830, 7
    %v832 = vsub.s32 %v665, %v831
    %v833 = vrot.slane %v804, %v832
    %v834 = vlaneseq
    %v835 = vshrl.u32 %v834, 7
    %v836 = vsub.s32 %v665, %v835
    %v837 = vrot.slane %v807, %v836
    %v838 = vlaneseq
    %v839 = vshrl.u32 %v838, 7
    %v840 = vsub.s32 %v665, %v839
    %v841 = vrot.slane %v810, %v840
    %v842 = vlaneseq
    %v843 = vshrl.u32 %v842, 7
    %v844 = vsub.s32 %v665, %v843
    %v845 = vrot.slane %v813, %v844
    %v846 = vsel %vm698, %v821, %v817
    %v847 = vsel %vm700, %v825, %v846
    %v848 = vsel %vm702, %v829, %v847
    %v849 = vsel %vm704, %v833, %v848
    %v850 = vsel %vm706, %v837, %v849
    %v851 = vsel %vm708, %v841, %v850
    %v852 = vsel %vm710, %v845, %v851
    %v854 = vsel %vm713, %v852, 0.0
    %855 = vadd.xlane.f32.xlu0 %v854
    %v856 = vpop.xlane.xlu0 %855
    %v858 = vlaneseq
    %v859 = vshrl.u32 %v858, 7
    %v860 = vsub.s32 0, %v859
    %v861 = vrot.slane %v856, %v860
    %v862 = vlaneseq
    %v863 = vshrl.u32 %v862, 7
    %v864 = vsub.s32 1, %v863
    %v865 = vrot.slane %v856, %v864
    %v866 = vlaneseq
    %v867 = vshrl.u32 %v866, 7
    %v868 = vsub.s32 2, %v867
    %v869 = vrot.slane %v856, %v868
    %v870 = vlaneseq
    %v871 = vshrl.u32 %v870, 7
    %v872 = vsub.s32 3, %v871
    %v873 = vrot.slane %v856, %v872
    %v874 = vlaneseq
    %v875 = vshrl.u32 %v874, 7
    %v876 = vsub.s32 4, %v875
    %v877 = vrot.slane %v856, %v876
    %v878 = vlaneseq
    %v879 = vshrl.u32 %v878, 7
    %v880 = vsub.s32 5, %v879
    %v881 = vrot.slane %v856, %v880
    %v882 = vlaneseq
    %v883 = vshrl.u32 %v882, 7
    %v884 = vsub.s32 6, %v883
    %v885 = vrot.slane %v856, %v884
    %v886 = vlaneseq
    %v887 = vshrl.u32 %v886, 7
    %v888 = vsub.s32 7, %v887
    %v889 = vrot.slane %v856, %v888
    %v898 = vrcp.pop %v861
    %v899 = vmul.f32 %v767, %v898
    %v900 = vrcp.pop %v865
    %v901 = vmul.f32 %v769, %v900
    %v902 = vrcp.pop %v869
    %v903 = vmul.f32 %v771, %v902
    %v904 = vrcp.pop %v873
    %v905 = vmul.f32 %v773, %v904
    %v906 = vrcp.pop %v877
    %v907 = vmul.f32 %v775, %v906
    %v908 = vrcp.pop %v881
    %v909 = vmul.f32 %v777, %v908
    %v910 = vrcp.pop %v885
    %v911 = vmul.f32 %v779, %v910
    %v912 = vrcp.pop %v889
    %v913 = vmul.f32 %v781, %v912
    %v914 = vld [vmem:[#allocation12] sm:$0xff]
    %v915 = vld [vmem:[#allocation12 + $0x8] sm:$0xff]
    %v916 = vld [vmem:[#allocation12 + $0x10] sm:$0xff]
    %v917 = vld [vmem:[#allocation12 + $0x18] sm:$0xff]
    %v918 = vld [vmem:[#allocation12 + $0x20] sm:$0xff]
    %v919 = vld [vmem:[#allocation12 + $0x28] sm:$0xff]
    %v920 = vld [vmem:[#allocation12 + $0x30] sm:$0xff]
    %v921 = vld [vmem:[#allocation12 + $0x38] sm:$0xff]
    %923 = vset.pattern.permute.xlu0 0
    %924 = vperm.xlu0 %923, %v899
    %v925 = vpop.permute.xlu0 %924
    %v926 = vlaneseq
    %v927 = vshrl.u32 %v926, 7
    %v928 = vsub.s32 %v665, %v927
    %v929 = vrot.slane %v925, %v928
    %v930 = vsel %vm713, %v929, 0
    %932 = vmatprep.subr.mxu0 0.0
    %933 = vmatpush1.msra.mxu0 %v914
    %934 = vmatprep.subr.mxu0 0.0
    %935 = vmatpush1.msra.mxu0 0.0
    %936 = vmatprep.subr.mxu0 0.0
    %937 = vmatpush1.msra.mxu0 0.0
    %938 = vmatprep.subr.mxu0 0.0
    %939 = vmatpush1.msra.mxu0 0.0
    %940 = vmatprep.subr.mxu0 0.0
    %941 = vmatpush1.msra.mxu0 0.0
    %942 = vmatprep.subr.mxu0 0.0
    %943 = vmatpush1.msra.mxu0 0.0
    %944 = vmatprep.subr.mxu0 0.0
    %945 = vmatpush1.msra.mxu0 0.0
    %946 = vmatprep.subr.mxu0 0.0
    %947 = vmatpush1.msra.mxu0 0.0
    %948 = vmatprep.subr.mxu0 0.0
    %949 = vmatpush1.msra.mxu0 0.0
    %950 = vmatprep.subr.mxu0 0.0
    %951 = vmatpush1.msra.mxu0 0.0
    %952 = vmatprep.subr.mxu0 0.0
    %953 = vmatpush1.msra.mxu0 0.0
    %954 = vmatprep.subr.mxu0 0.0
    %955 = vmatpush1.msra.mxu0 0.0
    %956 = vmatprep.subr.mxu0 0.0
    %957 = vmatpush1.msra.mxu0 0.0
    %958 = vmatprep.subr.mxu0 0.0
    %959 = vmatpush1.msra.mxu0 0.0
    %960 = vmatprep.subr.mxu0 0.0
    %961 = vmatpush1.msra.mxu0 0.0
    %962 = vmatprep.subr.mxu0 0.0
    %963 = vmatpush1.msra.mxu0 0.0
    %964 = vmatprep.subr.mxu0 0.0
    %965 = vmatpush1.msra.mxu0 0.0
    %966 = vmatprep.subr.mxu0 0.0
    %967 = vmatpush1.msra.mxu0 0.0
    %968 = vmatprep.subr.mxu0 0.0
    %969 = vmatpush1.msra.mxu0 0.0
    %970 = vmatprep.subr.mxu0 0.0
    %971 = vmatpush1.msra.mxu0 0.0
    %972 = vmatprep.subr.mxu0 0.0
    %973 = vmatpush1.msra.mxu0 0.0
    %974 = vmatprep.subr.mxu0 0.0
    %975 = vmatpush1.msra.mxu0 0.0
    %976 = vmatprep.subr.mxu0 0.0
    %977 = vmatpush1.msra.mxu0 0.0
    %978 = vmatprep.subr.mxu0 0.0
    %979 = vmatpush1.msra.mxu0 0.0
    %980 = vmatprep.subr.mxu0 0.0
    %981 = vmatpush1.msra.mxu0 0.0
    %982 = vmatprep.subr.mxu0 0.0
    %983 = vmatpush1.msra.mxu0 0.0
    %984 = vmatprep.subr.mxu0 0.0
    %985 = vmatpush1.msra.mxu0 0.0
    %986 = vmatprep.subr.mxu0 0.0
    %987 = vmatpush1.msra.mxu0 0.0
    %988 = vmatprep.subr.mxu0 0.0
    %989 = vmatpush1.msra.mxu0 0.0
    %990 = vmatprep.subr.mxu0 0.0
    %991 = vmatpush1.msra.mxu0 0.0
    %992 = vmatprep.subr.mxu0 0.0
    %993 = vmatpush1.msra.mxu0 0.0
    %994 = vmatprep.subr.mxu0 0.0
    %995 = vmatpush1.msra.mxu0 0.0
    %996 = vmatprep.mubr.f32.mxu0 0.0
    %997 = vmatmul.mubr.f32.gmra.mrb[0].mxu0 %v930
    %v998 = vpop.f32.mrb[0].mxu0
    %v999 = vadd.f32 0.0, %v998
    %v1000 = vpop.f32.mrb[0].mxu0
    %1001 = vdwg.mxu0
    %1003 = vset.pattern.permute.xlu0 0
    %1004 = vperm.xlu0 %1003, %v901
    %v1005 = vpop.permute.xlu0 %1004
    %v1006 = vlaneseq
    %v1007 = vshrl.u32 %v1006, 7
    %v1008 = vsub.s32 %v665, %v1007
    %v1009 = vrot.slane %v1005, %v1008
    %v1010 = vsel %vm713, %v1009, 0
    %1012 = vmatprep.subr.mxu0 0.0
    %1013 = vmatpush1.msra.mxu0 %v915
    %1014 = vmatprep.subr.mxu0 0.0
    %1015 = vmatpush1.msra.mxu0 0.0
    %1016 = vmatprep.subr.mxu0 0.0
    %1017 = vmatpush1.msra.mxu0 0.0
    %1018 = vmatprep.subr.mxu0 0.0
    %1019 = vmatpush1.msra.mxu0 0.0
    %1020 = vmatprep.subr.mxu0 0.0
    %1021 = vmatpush1.msra.mxu0 0.0
    %1022 = vmatprep.subr.mxu0 0.0
    %1023 = vmatpush1.msra.mxu0 0.0
    %1024 = vmatprep.subr.mxu0 0.0
    %1025 = vmatpush1.msra.mxu0 0.0
    %1026 = vmatprep.subr.mxu0 0.0
    %1027 = vmatpush1.msra.mxu0 0.0
    %1028 = vmatprep.subr.mxu0 0.0
    %1029 = vmatpush1.msra.mxu0 0.0
    %1030 = vmatprep.subr.mxu0 0.0
    %1031 = vmatpush1.msra.mxu0 0.0
    %1032 = vmatprep.subr.mxu0 0.0
    %1033 = vmatpush1.msra.mxu0 0.0
    %1034 = vmatprep.subr.mxu0 0.0
    %1035 = vmatpush1.msra.mxu0 0.0
    %1036 = vmatprep.subr.mxu0 0.0
    %1037 = vmatpush1.msra.mxu0 0.0
    %1038 = vmatprep.subr.mxu0 0.0
    %1039 = vmatpush1.msra.mxu0 0.0
    %1040 = vmatprep.subr.mxu0 0.0
    %1041 = vmatpush1.msra.mxu0 0.0
    %1042 = vmatprep.subr.mxu0 0.0
    %1043 = vmatpush1.msra.mxu0 0.0
    %1044 = vmatprep.subr.mxu0 0.0
    %1045 = vmatpush1.msra.mxu0 0.0
    %1046 = vmatprep.subr.mxu0 0.0
    %1047 = vmatpush1.msra.mxu0 0.0
    %1048 = vmatprep.subr.mxu0 0.0
    %1049 = vmatpush1.msra.mxu0 0.0
    %1050 = vmatprep.subr.mxu0 0.0
    %1051 = vmatpush1.msra.mxu0 0.0
    %1052 = vmatprep.subr.mxu0 0.0
    %1053 = vmatpush1.msra.mxu0 0.0
    %1054 = vmatprep.subr.mxu0 0.0
    %1055 = vmatpush1.msra.mxu0 0.0
    %1056 = vmatprep.subr.mxu0 0.0
    %1057 = vmatpush1.msra.mxu0 0.0
    %1058 = vmatprep.subr.mxu0 0.0
    %1059 = vmatpush1.msra.mxu0 0.0
    %1060 = vmatprep.subr.mxu0 0.0
    %1061 = vmatpush1.msra.mxu0 0.0
    %1062 = vmatprep.subr.mxu0 0.0
    %1063 = vmatpush1.msra.mxu0 0.0
    %1064 = vmatprep.subr.mxu0 0.0
    %1065 = vmatpush1.msra.mxu0 0.0
    %1066 = vmatprep.subr.mxu0 0.0
    %1067 = vmatpush1.msra.mxu0 0.0
    %1068 = vmatprep.subr.mxu0 0.0
    %1069 = vmatpush1.msra.mxu0 0.0
    %1070 = vmatprep.subr.mxu0 0.0
    %1071 = vmatpush1.msra.mxu0 0.0
    %1072 = vmatprep.subr.mxu0 0.0
    %1073 = vmatpush1.msra.mxu0 0.0
    %1074 = vmatprep.subr.mxu0 0.0
    %1075 = vmatpush1.msra.mxu0 0.0
    %1076 = vmatprep.mubr.f32.mxu0 0.0
    %1077 = vmatmul.mubr.f32.gmra.mrb[0].mxu0 %v1010
    %v1078 = vpop.f32.mrb[0].mxu0
    %v1079 = vadd.f32 0.0, %v1078
    %v1080 = vpop.f32.mrb[0].mxu0
    %1081 = vdwg.mxu0
    %1083 = vset.pattern.permute.xlu0 0
    %1084 = vperm.xlu0 %1083, %v903
    %v1085 = vpop.permute.xlu0 %1084
    %v1086 = vlaneseq
    %v1087 = vshrl.u32 %v1086, 7
    %v1088 = vsub.s32 %v665, %v1087
    %v1089 = vrot.slane %v1085, %v1088
    %v1090 = vsel %vm713, %v1089, 0
    %1092 = vmatprep.subr.mxu0 0.0
    %1093 = vmatpush1.msra.mxu0 %v916
    %1094 = vmatprep.subr.mxu0 0.0
    %1095 = vmatpush1.msra.mxu0 0.0
    %1096 = vmatprep.subr.mxu0 0.0
    %1097 = vmatpush1.msra.mxu0 0.0
    %1098 = vmatprep.subr.mxu0 0.0
    %1099 = vmatpush1.msra.mxu0 0.0
    %1100 = vmatprep.subr.mxu0 0.0
    %1101 = vmatpush1.msra.mxu0 0.0
    %1102 = vmatprep.subr.mxu0 0.0
    %1103 = vmatpush1.msra.mxu0 0.0
    %1104 = vmatprep.subr.mxu0 0.0
    %1105 = vmatpush1.msra.mxu0 0.0
    %1106 = vmatprep.subr.mxu0 0.0
    %1107 = vmatpush1.msra.mxu0 0.0
    %1108 = vmatprep.subr.mxu0 0.0
    %1109 = vmatpush1.msra.mxu0 0.0
    %1110 = vmatprep.subr.mxu0 0.0
    %1111 = vmatpush1.msra.mxu0 0.0
    %1112 = vmatprep.subr.mxu0 0.0
    %1113 = vmatpush1.msra.mxu0 0.0
    %1114 = vmatprep.subr.mxu0 0.0
    %1115 = vmatpush1.msra.mxu0 0.0
    %1116 = vmatprep.subr.mxu0 0.0
    %1117 = vmatpush1.msra.mxu0 0.0
    %1118 = vmatprep.subr.mxu0 0.0
    %1119 = vmatpush1.msra.mxu0 0.0
    %1120 = vmatprep.subr.mxu0 0.0
    %1121 = vmatpush1.msra.mxu0 0.0
    %1122 = vmatprep.subr.mxu0 0.0
    %1123 = vmatpush1.msra.mxu0 0.0
    %1124 = vmatprep.subr.mxu0 0.0
    %1125 = vmatpush1.msra.mxu0 0.0
    %1126 = vmatprep.subr.mxu0 0.0
    %1127 = vmatpush1.msra.mxu0 0.0
    %1128 = vmatprep.subr.mxu0 0.0
    %1129 = vmatpush1.msra.mxu0 0.0
    %1130 = vmatprep.subr.mxu0 0.0
    %1131 = vmatpush1.msra.mxu0 0.0
    %1132 = vmatprep.subr.mxu0 0.0
    %1133 = vmatpush1.msra.mxu0 0.0
    %1134 = vmatprep.subr.mxu0 0.0
    %1135 = vmatpush1.msra.mxu0 0.0
    %1136 = vmatprep.subr.mxu0 0.0
    %1137 = vmatpush1.msra.mxu0 0.0
    %1138 = vmatprep.subr.mxu0 0.0
    %1139 = vmatpush1.msra.mxu0 0.0
    %1140 = vmatprep.subr.mxu0 0.0
    %1141 = vmatpush1.msra.mxu0 0.0
    %1142 = vmatprep.subr.mxu0 0.0
    %1143 = vmatpush1.msra.mxu0 0.0
    %1144 = vmatprep.subr.mxu0 0.0
    %1145 = vmatpush1.msra.mxu0 0.0
    %1146 = vmatprep.subr.mxu0 0.0
    %1147 = vmatpush1.msra.mxu0 0.0
    %1148 = vmatprep.subr.mxu0 0.0
    %1149 = vmatpush1.msra.mxu0 0.0
    %1150 = vmatprep.subr.mxu0 0.0
    %1151 = vmatpush1.msra.mxu0 0.0
    %1152 = vmatprep.subr.mxu0 0.0
    %1153 = vmatpush1.msra.mxu0 0.0
    %1154 = vmatprep.subr.mxu0 0.0
    %1155 = vmatpush1.msra.mxu0 0.0
    %1156 = vmatprep.mubr.f32.mxu0 0.0
    %1157 = vmatmul.mubr.f32.gmra.mrb[0].mxu0 %v1090
    %v1158 = vpop.f32.mrb[0].mxu0
    %v1159 = vadd.f32 0.0, %v1158
    %v1160 = vpop.f32.mrb[0].mxu0
    %1161 = vdwg.mxu0
    %1163 = vset.pattern.permute.xlu0 0
    %1164 = vperm.xlu0 %1163, %v905
    %v1165 = vpop.permute.xlu0 %1164
    %v1166 = vlaneseq
    %v1167 = vshrl.u32 %v1166, 7
    %v1168 = vsub.s32 %v665, %v1167
    %v1169 = vrot.slane %v1165, %v1168
    %v1170 = vsel %vm713, %v1169, 0
    %1172 = vmatprep.subr.mxu0 0.0
    %1173 = vmatpush1.msra.mxu0 %v917
    %1174 = vmatprep.subr.mxu0 0.0
    %1175 = vmatpush1.msra.mxu0 0.0
    %1176 = vmatprep.subr.mxu0 0.0
    %1177 = vmatpush1.msra.mxu0 0.0
    %1178 = vmatprep.subr.mxu0 0.0
    %1179 = vmatpush1.msra.mxu0 0.0
    %1180 = vmatprep.subr.mxu0 0.0
    %1181 = vmatpush1.msra.mxu0 0.0
    %1182 = vmatprep.subr.mxu0 0.0
    %1183 = vmatpush1.msra.mxu0 0.0
    %1184 = vmatprep.subr.mxu0 0.0
    %1185 = vmatpush1.msra.mxu0 0.0
    %1186 = vmatprep.subr.mxu0 0.0
    %1187 = vmatpush1.msra.mxu0 0.0
    %1188 = vmatprep.subr.mxu0 0.0
    %1189 = vmatpush1.msra.mxu0 0.0
    %1190 = vmatprep.subr.mxu0 0.0
    %1191 = vmatpush1.msra.mxu0 0.0
    %1192 = vmatprep.subr.mxu0 0.0
    %1193 = vmatpush1.msra.mxu0 0.0
    %1194 = vmatprep.subr.mxu0 0.0
    %1195 = vmatpush1.msra.mxu0 0.0
    %1196 = vmatprep.subr.mxu0 0.0
    %1197 = vmatpush1.msra.mxu0 0.0
    %1198 = vmatprep.subr.mxu0 0.0
    %1199 = vmatpush1.msra.mxu0 0.0
    %1200 = vmatprep.subr.mxu0 0.0
    %1201 = vmatpush1.msra.mxu0 0.0
    %1202 = vmatprep.subr.mxu0 0.0
    %1203 = vmatpush1.msra.mxu0 0.0
    %1204 = vmatprep.subr.mxu0 0.0
    %1205 = vmatpush1.msra.mxu0 0.0
    %1206 = vmatprep.subr.mxu0 0.0
    %1207 = vmatpush1.msra.mxu0 0.0
    %1208 = vmatprep.subr.mxu0 0.0
    %1209 = vmatpush1.msra.mxu0 0.0
    %1210 = vmatprep.subr.mxu0 0.0
    %1211 = vmatpush1.msra.mxu0 0.0
    %1212 = vmatprep.subr.mxu0 0.0
    %1213 = vmatpush1.msra.mxu0 0.0
    %1214 = vmatprep.subr.mxu0 0.0
    %1215 = vmatpush1.msra.mxu0 0.0
    %1216 = vmatprep.subr.mxu0 0.0
    %1217 = vmatpush1.msra.mxu0 0.0
    %1218 = vmatprep.subr.mxu0 0.0
    %1219 = vmatpush1.msra.mxu0 0.0
    %1220 = vmatprep.subr.mxu0 0.0
    %1221 = vmatpush1.msra.mxu0 0.0
    %1222 = vmatprep.subr.mxu0 0.0
    %1223 = vmatpush1.msra.mxu0 0.0
    %1224 = vmatprep.subr.mxu0 0.0
    %1225 = vmatpush1.msra.mxu0 0.0
    %1226 = vmatprep.subr.mxu0 0.0
    %1227 = vmatpush1.msra.mxu0 0.0
    %1228 = vmatprep.subr.mxu0 0.0
    %1229 = vmatpush1.msra.mxu0 0.0
    %1230 = vmatprep.subr.mxu0 0.0
    %1231 = vmatpush1.msra.mxu0 0.0
    %1232 = vmatprep.subr.mxu0 0.0
    %1233 = vmatpush1.msra.mxu0 0.0
    %1234 = vmatprep.subr.mxu0 0.0
    %1235 = vmatpush1.msra.mxu0 0.0
    %1236 = vmatprep.mubr.f32.mxu0 0.0
    %1237 = vmatmul.mubr.f32.gmra.mrb[0].mxu0 %v1170
    %v1238 = vpop.f32.mrb[0].mxu0
    %v1239 = vadd.f32 0.0, %v1238
    %v1240 = vpop.f32.mrb[0].mxu0
    %1241 = vdwg.mxu0
    %1243 = vset.pattern.permute.xlu0 0
    %1244 = vperm.xlu0 %1243, %v907
    %v1245 = vpop.permute.xlu0 %1244
    %v1246 = vlaneseq
    %v1247 = vshrl.u32 %v1246, 7
    %v1248 = vsub.s32 %v665, %v1247
    %v1249 = vrot.slane %v1245, %v1248
    %v1250 = vsel %vm713, %v1249, 0
    %1252 = vmatprep.subr.mxu0 0.0
    %1253 = vmatpush1.msra.mxu0 %v918
    %1254 = vmatprep.subr.mxu0 0.0
    %1255 = vmatpush1.msra.mxu0 0.0
    %1256 = vmatprep.subr.mxu0 0.0
    %1257 = vmatpush1.msra.mxu0 0.0
    %1258 = vmatprep.subr.mxu0 0.0
    %1259 = vmatpush1.msra.mxu0 0.0
    %1260 = vmatprep.subr.mxu0 0.0
    %1261 = vmatpush1.msra.mxu0 0.0
    %1262 = vmatprep.subr.mxu0 0.0
    %1263 = vmatpush1.msra.mxu0 0.0
    %1264 = vmatprep.subr.mxu0 0.0
    %1265 = vmatpush1.msra.mxu0 0.0
    %1266 = vmatprep.subr.mxu0 0.0
    %1267 = vmatpush1.msra.mxu0 0.0
    %1268 = vmatprep.subr.mxu0 0.0
    %1269 = vmatpush1.msra.mxu0 0.0
    %1270 = vmatprep.subr.mxu0 0.0
    %1271 = vmatpush1.msra.mxu0 0.0
    %1272 = vmatprep.subr.mxu0 0.0
    %1273 = vmatpush1.msra.mxu0 0.0
    %1274 = vmatprep.subr.mxu0 0.0
    %1275 = vmatpush1.msra.mxu0 0.0
    %1276 = vmatprep.subr.mxu0 0.0
    %1277 = vmatpush1.msra.mxu0 0.0
    %1278 = vmatprep.subr.mxu0 0.0
    %1279 = vmatpush1.msra.mxu0 0.0
    %1280 = vmatprep.subr.mxu0 0.0
    %1281 = vmatpush1.msra.mxu0 0.0
    %1282 = vmatprep.subr.mxu0 0.0
    %1283 = vmatpush1.msra.mxu0 0.0
    %1284 = vmatprep.subr.mxu0 0.0
    %1285 = vmatpush1.msra.mxu0 0.0
    %1286 = vmatprep.subr.mxu0 0.0
    %1287 = vmatpush1.msra.mxu0 0.0
    %1288 = vmatprep.subr.mxu0 0.0
    %1289 = vmatpush1.msra.mxu0 0.0
    %1290 = vmatprep.subr.mxu0 0.0
    %1291 = vmatpush1.msra.mxu0 0.0
    %1292 = vmatprep.subr.mxu0 0.0
    %1293 = vmatpush1.msra.mxu0 0.0
    %1294 = vmatprep.subr.mxu0 0.0
    %1295 = vmatpush1.msra.mxu0 0.0
    %1296 = vmatprep.subr.mxu0 0.0
    %1297 = vmatpush1.msra.mxu0 0.0
    %1298 = vmatprep.subr.mxu0 0.0
    %1299 = vmatpush1.msra.mxu0 0.0
    %1300 = vmatprep.subr.mxu0 0.0
    %1301 = vmatpush1.msra.mxu0 0.0
    %1302 = vmatprep.subr.mxu0 0.0
    %1303 = vmatpush1.msra.mxu0 0.0
    %1304 = vmatprep.subr.mxu0 0.0
    %1305 = vmatpush1.msra.mxu0 0.0
    %1306 = vmatprep.subr.mxu0 0.0
    %1307 = vmatpush1.msra.mxu0 0.0
    %1308 = vmatprep.subr.mxu0 0.0
    %1309 = vmatpush1.msra.mxu0 0.0
    %1310 = vmatprep.subr.mxu0 0.0
    %1311 = vmatpush1.msra.mxu0 0.0
    %1312 = vmatprep.subr.mxu0 0.0
    %1313 = vmatpush1.msra.mxu0 0.0
    %1314 = vmatprep.subr.mxu0 0.0
    %1315 = vmatpush1.msra.mxu0 0.0
    %1316 = vmatprep.mubr.f32.mxu0 0.0
    %1317 = vmatmul.mubr.f32.gmra.mrb[0].mxu0 %v1250
    %v1318 = vpop.f32.mrb[0].mxu0
    %v1319 = vadd.f32 0.0, %v1318
    %v1320 = vpop.f32.mrb[0].mxu0
    %1321 = vdwg.mxu0
    %1323 = vset.pattern.permute.xlu0 0
    %1324 = vperm.xlu0 %1323, %v909
    %v1325 = vpop.permute.xlu0 %1324
    %v1326 = vlaneseq
    %v1327 = vshrl.u32 %v1326, 7
    %v1328 = vsub.s32 %v665, %v1327
    %v1329 = vrot.slane %v1325, %v1328
    %v1330 = vsel %vm713, %v1329, 0
    %1332 = vmatprep.subr.mxu0 0.0
    %1333 = vmatpush1.msra.mxu0 %v919
    %1334 = vmatprep.subr.mxu0 0.0
    %1335 = vmatpush1.msra.mxu0 0.0
    %1336 = vmatprep.subr.mxu0 0.0
    %1337 = vmatpush1.msra.mxu0 0.0
    %1338 = vmatprep.subr.mxu0 0.0
    %1339 = vmatpush1.msra.mxu0 0.0
    %1340 = vmatprep.subr.mxu0 0.0
    %1341 = vmatpush1.msra.mxu0 0.0
    %1342 = vmatprep.subr.mxu0 0.0
    %1343 = vmatpush1.msra.mxu0 0.0
    %1344 = vmatprep.subr.mxu0 0.0
    %1345 = vmatpush1.msra.mxu0 0.0
    %1346 = vmatprep.subr.mxu0 0.0
    %1347 = vmatpush1.msra.mxu0 0.0
    %1348 = vmatprep.subr.mxu0 0.0
    %1349 = vmatpush1.msra.mxu0 0.0
    %1350 = vmatprep.subr.mxu0 0.0
    %1351 = vmatpush1.msra.mxu0 0.0
    %1352 = vmatprep.subr.mxu0 0.0
    %1353 = vmatpush1.msra.mxu0 0.0
    %1354 = vmatprep.subr.mxu0 0.0
    %1355 = vmatpush1.msra.mxu0 0.0
    %1356 = vmatprep.subr.mxu0 0.0
    %1357 = vmatpush1.msra.mxu0 0.0
    %1358 = vmatprep.subr.mxu0 0.0
    %1359 = vmatpush1.msra.mxu0 0.0
    %1360 = vmatprep.subr.mxu0 0.0
    %1361 = vmatpush1.msra.mxu0 0.0
    %1362 = vmatprep.subr.mxu0 0.0
    %1363 = vmatpush1.msra.mxu0 0.0
    %1364 = vmatprep.subr.mxu0 0.0
    %1365 = vmatpush1.msra.mxu0 0.0
    %1366 = vmatprep.subr.mxu0 0.0
    %1367 = vmatpush1.msra.mxu0 0.0
    %1368 = vmatprep.subr.mxu0 0.0
    %1369 = vmatpush1.msra.mxu0 0.0
    %1370 = vmatprep.subr.mxu0 0.0
    %1371 = vmatpush1.msra.mxu0 0.0
    %1372 = vmatprep.subr.mxu0 0.0
    %1373 = vmatpush1.msra.mxu0 0.0
    %1374 = vmatprep.subr.mxu0 0.0
    %1375 = vmatpush1.msra.mxu0 0.0
    %1376 = vmatprep.subr.mxu0 0.0
    %1377 = vmatpush1.msra.mxu0 0.0
    %1378 = vmatprep.subr.mxu0 0.0
    %1379 = vmatpush1.msra.mxu0 0.0
    %1380 = vmatprep.subr.mxu0 0.0
    %1381 = vmatpush1.msra.mxu0 0.0
    %1382 = vmatprep.subr.mxu0 0.0
    %1383 = vmatpush1.msra.mxu0 0.0
    %1384 = vmatprep.subr.mxu0 0.0
    %1385 = vmatpush1.msra.mxu0 0.0
    %1386 = vmatprep.subr.mxu0 0.0
    %1387 = vmatpush1.msra.mxu0 0.0
    %1388 = vmatprep.subr.mxu0 0.0
    %1389 = vmatpush1.msra.mxu0 0.0
    %1390 = vmatprep.subr.mxu0 0.0
    %1391 = vmatpush1.msra.mxu0 0.0
    %1392 = vmatprep.subr.mxu0 0.0
    %1393 = vmatpush1.msra.mxu0 0.0
    %1394 = vmatprep.subr.mxu0 0.0
    %1395 = vmatpush1.msra.mxu0 0.0
    %1396 = vmatprep.mubr.f32.mxu0 0.0
    %1397 = vmatmul.mubr.f32.gmra.mrb[0].mxu0 %v1330
    %v1398 = vpop.f32.mrb[0].mxu0
    %v1399 = vadd.f32 0.0, %v1398
    %v1400 = vpop.f32.mrb[0].mxu0
    %1401 = vdwg.mxu0
    %1403 = vset.pattern.permute.xlu0 0
    %1404 = vperm.xlu0 %1403, %v911
    %v1405 = vpop.permute.xlu0 %1404
    %v1406 = vlaneseq
    %v1407 = vshrl.u32 %v1406, 7
    %v1408 = vsub.s32 %v665, %v1407
    %v1409 = vrot.slane %v1405, %v1408
    %v1410 = vsel %vm713, %v1409, 0
    %1412 = vmatprep.subr.mxu0 0.0
    %1413 = vmatpush1.msra.mxu0 %v920
    %1414 = vmatprep.subr.mxu0 0.0
    %1415 = vmatpush1.msra.mxu0 0.0
    %1416 = vmatprep.subr.mxu0 0.0
    %1417 = vmatpush1.msra.mxu0 0.0
    %1418 = vmatprep.subr.mxu0 0.0
    %1419 = vmatpush1.msra.mxu0 0.0
    %1420 = vmatprep.subr.mxu0 0.0
    %1421 = vmatpush1.msra.mxu0 0.0
    %1422 = vmatprep.subr.mxu0 0.0
    %1423 = vmatpush1.msra.mxu0 0.0
    %1424 = vmatprep.subr.mxu0 0.0
    %1425 = vmatpush1.msra.mxu0 0.0
    %1426 = vmatprep.subr.mxu0 0.0
    %1427 = vmatpush1.msra.mxu0 0.0
    %1428 = vmatprep.subr.mxu0 0.0
    %1429 = vmatpush1.msra.mxu0 0.0
    %1430 = vmatprep.subr.mxu0 0.0
    %1431 = vmatpush1.msra.mxu0 0.0
    %1432 = vmatprep.subr.mxu0 0.0
    %1433 = vmatpush1.msra.mxu0 0.0
    %1434 = vmatprep.subr.mxu0 0.0
    %1435 = vmatpush1.msra.mxu0 0.0
    %1436 = vmatprep.subr.mxu0 0.0
    %1437 = vmatpush1.msra.mxu0 0.0
    %1438 = vmatprep.subr.mxu0 0.0
    %1439 = vmatpush1.msra.mxu0 0.0
    %1440 = vmatprep.subr.mxu0 0.0
    %1441 = vmatpush1.msra.mxu0 0.0
    %1442 = vmatprep.subr.mxu0 0.0
    %1443 = vmatpush1.msra.mxu0 0.0
    %1444 = vmatprep.subr.mxu0 0.0
    %1445 = vmatpush1.msra.mxu0 0.0
    %1446 = vmatprep.subr.mxu0 0.0
    %1447 = vmatpush1.msra.mxu0 0.0
    %1448 = vmatprep.subr.mxu0 0.0
    %1449 = vmatpush1.msra.mxu0 0.0
    %1450 = vmatprep.subr.mxu0 0.0
    %1451 = vmatpush1.msra.mxu0 0.0
    %1452 = vmatprep.subr.mxu0 0.0
    %1453 = vmatpush1.msra.mxu0 0.0
    %1454 = vmatprep.subr.mxu0 0.0
    %1455 = vmatpush1.msra.mxu0 0.0
    %1456 = vmatprep.subr.mxu0 0.0
    %1457 = vmatpush1.msra.mxu0 0.0
    %1458 = vmatprep.subr.mxu0 0.0
    %1459 = vmatpush1.msra.mxu0 0.0
    %1460 = vmatprep.subr.mxu0 0.0
    %1461 = vmatpush1.msra.mxu0 0.0
    %1462 = vmatprep.subr.mxu0 0.0
    %1463 = vmatpush1.msra.mxu0 0.0
    %1464 = vmatprep.subr.mxu0 0.0
    %1465 = vmatpush1.msra.mxu0 0.0
    %1466 = vmatprep.subr.mxu0 0.0
    %1467 = vmatpush1.msra.mxu0 0.0
    %1468 = vmatprep.subr.mxu0 0.0
    %1469 = vmatpush1.msra.mxu0 0.0
    %1470 = vmatprep.subr.mxu0 0.0
    %1471 = vmatpush1.msra.mxu0 0.0
    %1472 = vmatprep.subr.mxu0 0.0
    %1473 = vmatpush1.msra.mxu0 0.0
    %1474 = vmatprep.subr.mxu0 0.0
    %1475 = vmatpush1.msra.mxu0 0.0
    %1476 = vmatprep.mubr.f32.mxu0 0.0
    %1477 = vmatmul.mubr.f32.gmra.mrb[0].mxu0 %v1410
    %v1478 = vpop.f32.mrb[0].mxu0
    %v1479 = vadd.f32 0.0, %v1478
    %v1480 = vpop.f32.mrb[0].mxu0
    %1481 = vdwg.mxu0
    %1483 = vset.pattern.permute.xlu0 0
    %1484 = vperm.xlu0 %1483, %v913
    %v1485 = vpop.permute.xlu0 %1484
    %v1486 = vlaneseq
    %v1487 = vshrl.u32 %v1486, 7
    %v1488 = vsub.s32 %v665, %v1487
    %v1489 = vrot.slane %v1485, %v1488
    %v1490 = vsel %vm713, %v1489, 0
    %1492 = vmatprep.subr.mxu0 0.0
    %1493 = vmatpush1.msra.mxu0 %v921
    %1494 = vmatprep.subr.mxu0 0.0
    %1495 = vmatpush1.msra.mxu0 0.0
    %1496 = vmatprep.subr.mxu0 0.0
    %1497 = vmatpush1.msra.mxu0 0.0
    %1498 = vmatprep.subr.mxu0 0.0
    %1499 = vmatpush1.msra.mxu0 0.0
    %1500 = vmatprep.subr.mxu0 0.0
    %1501 = vmatpush1.msra.mxu0 0.0
    %1502 = vmatprep.subr.mxu0 0.0
    %1503 = vmatpush1.msra.mxu0 0.0
    %1504 = vmatprep.subr.mxu0 0.0
    %1505 = vmatpush1.msra.mxu0 0.0
    %1506 = vmatprep.subr.mxu0 0.0
    %1507 = vmatpush1.msra.mxu0 0.0
    %1508 = vmatprep.subr.mxu0 0.0
    %1509 = vmatpush1.msra.mxu0 0.0
    %1510 = vmatprep.subr.mxu0 0.0
    %1511 = vmatpush1.msra.mxu0 0.0
    %1512 = vmatprep.subr.mxu0 0.0
    %1513 = vmatpush1.msra.mxu0 0.0
    %1514 = vmatprep.subr.mxu0 0.0
    %1515 = vmatpush1.msra.mxu0 0.0
    %1516 = vmatprep.subr.mxu0 0.0
    %1517 = vmatpush1.msra.mxu0 0.0
    %1518 = vmatprep.subr.mxu0 0.0
    %1519 = vmatpush1.msra.mxu0 0.0
    %1520 = vmatprep.subr.mxu0 0.0
    %1521 = vmatpush1.msra.mxu0 0.0
    %1522 = vmatprep.subr.mxu0 0.0
    %1523 = vmatpush1.msra.mxu0 0.0
    %1524 = vmatprep.subr.mxu0 0.0
    %1525 = vmatpush1.msra.mxu0 0.0
    %1526 = vmatprep.subr.mxu0 0.0
    %1527 = vmatpush1.msra.mxu0 0.0
    %1528 = vmatprep.subr.mxu0 0.0
    %1529 = vmatpush1.msra.mxu0 0.0
    %1530 = vmatprep.subr.mxu0 0.0
    %1531 = vmatpush1.msra.mxu0 0.0
    %1532 = vmatprep.subr.mxu0 0.0
    %1533 = vmatpush1.msra.mxu0 0.0
    %1534 = vmatprep.subr.mxu0 0.0
    %1535 = vmatpush1.msra.mxu0 0.0
    %1536 = vmatprep.subr.mxu0 0.0
    %1537 = vmatpush1.msra.mxu0 0.0
    %1538 = vmatprep.subr.mxu0 0.0
    %1539 = vmatpush1.msra.mxu0 0.0
    %1540 = vmatprep.subr.mxu0 0.0
    %1541 = vmatpush1.msra.mxu0 0.0
    %1542 = vmatprep.subr.mxu0 0.0
    %1543 = vmatpush1.msra.mxu0 0.0
    %1544 = vmatprep.subr.mxu0 0.0
    %1545 = vmatpush1.msra.mxu0 0.0
    %1546 = vmatprep.subr.mxu0 0.0
    %1547 = vmatpush1.msra.mxu0 0.0
    %1548 = vmatprep.subr.mxu0 0.0
    %1549 = vmatpush1.msra.mxu0 0.0
    %1550 = vmatprep.subr.mxu0 0.0
    %1551 = vmatpush1.msra.mxu0 0.0
    %1552 = vmatprep.subr.mxu0 0.0
    %1553 = vmatpush1.msra.mxu0 0.0
    %1554 = vmatprep.subr.mxu0 0.0
    %1555 = vmatpush1.msra.mxu0 0.0
    %1556 = vmatprep.mubr.f32.mxu0 0.0
    %1557 = vmatmul.mubr.f32.gmra.mrb[0].mxu0 %v1490
    %v1558 = vpop.f32.mrb[0].mxu0
    %v1559 = vadd.f32 0.0, %v1558
    %v1560 = vpop.f32.mrb[0].mxu0
    %1561 = vdwg.mxu0
    %v1570 = vrot.slane %v1079, 7
    %v1571 = vsel %vm698, %v1570, %v999
    %v1572 = vrot.slane %v1159, 6
    %v1573 = vsel %vm700, %v1572, %v1571
    %v1574 = vrot.slane %v1239, 5
    %v1575 = vsel %vm702, %v1574, %v1573
    %v1576 = vrot.slane %v1319, 4
    %v1577 = vsel %vm704, %v1576, %v1575
    %v1578 = vrot.slane %v1399, 3
    %v1579 = vsel %vm706, %v1578, %v1577
    %v1580 = vrot.slane %v1479, 2
    %v1581 = vsel %vm708, %v1580, %v1579
    %v1582 = vrot.slane %v1559, 1
    %v1583 = vsel %vm710, %v1582, %v1581
    %1585 = vrot.lane.b32.xlu0 %v288, 64
    %v1586 = vpop.permute.xlu0 %1585
    %1589 = vrot.lane.b32.xlu0 %v142, 64
    %v1590 = vpop.permute.xlu0 %1589
    %v1592 = vsel %vm160, %v1583, %v1586
    %v1593 = vsel %vm162, %v1592, %v1590
    %v1594 = vld [vmem:[%s8] sm:$0xff]
    %v1595 = vld [vmem:[%s8 + $0x8] sm:$0xff]
    %v1596 = vld [vmem:[%s8 + $0x10] sm:$0xff]
    %v1597 = vld [vmem:[%s8 + $0x18] sm:$0xff]
    %v1598 = vld [vmem:[%s8 + $0x20] sm:$0xff]
    %v1599 = vld [vmem:[%s8 + $0x28] sm:$0xff]
    %v1600 = vld [vmem:[%s8 + $0x30] sm:$0xff]
    %v1601 = vld [vmem:[%s8 + $0x38] sm:$0xff]
    %v1602 = vld [vmem:[%s8 + $0x40] sm:$0xff]
    %v1603 = vld [vmem:[%s8 + $0x48] sm:$0xff]
    %v1604 = vld [vmem:[%s8 + $0x50] sm:$0xff]
    %v1605 = vld [vmem:[%s8 + $0x58] sm:$0xff]
    %v1606 = vld [vmem:[%s9] sm:$0x1]
    %v1608 = vlaneseq
    %v1609 = vshrl.u32 %v1608, 7
    %v1610 = vsub.s32 0, %v1609
    %v1611 = vrot.slane %v1606, %v1610
    %vm1613 = vcmask 785408
    %v1615 = vsel %vm1613, %v1593, 0
    %1617 = vmatprep.subr.mxu0 0.0
    %1618 = vmatpush1.msra.mxu0 %v1594
    %1619 = vmatprep.subr.mxu0 0.0
    %1620 = vmatpush1.msra.mxu0 %v1595
    %1621 = vmatprep.subr.mxu0 0.0
    %1622 = vmatpush1.msra.mxu0 %v1596
    %1623 = vmatprep.subr.mxu0 0.0
    %1624 = vmatpush1.msra.mxu0 %v1597
    %1625 = vmatprep.subr.mxu0 0.0
    %1626 = vmatpush1.msra.mxu0 %v1598
    %1627 = vmatprep.subr.mxu0 0.0
    %1628 = vmatpush1.msra.mxu0 %v1599
    %1629 = vmatprep.subr.mxu0 0.0
    %1630 = vmatpush1.msra.mxu0 %v1600
    %1631 = vmatprep.subr.mxu0 0.0
    %1632 = vmatpush1.msra.mxu0 %v1601
    %1633 = vmatprep.subr.mxu0 0.0
    %1634 = vmatpush1.msra.mxu0 %v1602
    %1635 = vmatprep.subr.mxu0 0.0
    %1636 = vmatpush1.msra.mxu0 %v1603
    %1637 = vmatprep.subr.mxu0 0.0
    %1638 = vmatpush1.msra.mxu0 %v1604
    %1639 = vmatprep.subr.mxu0 0.0
    %1640 = vmatpush1.msra.mxu0 %v1605
    %1641 = vmatprep.subr.mxu0 0.0
    %1642 = vmatpush1.msra.mxu0 0.0
    %1643 = vmatprep.subr.mxu0 0.0
    %1644 = vmatpush1.msra.mxu0 0.0
    %1645 = vmatprep.subr.mxu0 0.0
    %1646 = vmatpush1.msra.mxu0 0.0
    %1647 = vmatprep.subr.mxu0 0.0
    %1648 = vmatpush1.msra.mxu0 0.0
    %1649 = vmatprep.subr.mxu0 0.0
    %1650 = vmatpush1.msra.mxu0 0.0
    %1651 = vmatprep.subr.mxu0 0.0
    %1652 = vmatpush1.msra.mxu0 0.0
    %1653 = vmatprep.subr.mxu0 0.0
    %1654 = vmatpush1.msra.mxu0 0.0
    %1655 = vmatprep.subr.mxu0 0.0
    %1656 = vmatpush1.msra.mxu0 0.0
    %1657 = vmatprep.subr.mxu0 0.0
    %1658 = vmatpush1.msra.mxu0 0.0
    %1659 = vmatprep.subr.mxu0 0.0
    %1660 = vmatpush1.msra.mxu0 0.0
    %1661 = vmatprep.subr.mxu0 0.0
    %1662 = vmatpush1.msra.mxu0 0.0
    %1663 = vmatprep.subr.mxu0 0.0
    %1664 = vmatpush1.msra.mxu0 0.0
    %1665 = vmatprep.subr.mxu0 0.0
    %1666 = vmatpush1.msra.mxu0 0.0
    %1667 = vmatprep.subr.mxu0 0.0
    %1668 = vmatpush1.msra.mxu0 0.0
    %1669 = vmatprep.subr.mxu0 0.0
    %1670 = vmatpush1.msra.mxu0 0.0
    %1671 = vmatprep.subr.mxu0 0.0
    %1672 = vmatpush1.msra.mxu0 0.0
    %1673 = vmatprep.subr.mxu0 0.0
    %1674 = vmatpush1.msra.mxu0 0.0
    %1675 = vmatprep.subr.mxu0 0.0
    %1676 = vmatpush1.msra.mxu0 0.0
    %1677 = vmatprep.subr.mxu0 0.0
    %1678 = vmatpush1.msra.mxu0 0.0
    %1679 = vmatprep.subr.mxu0 0.0
    %1680 = vmatpush1.msra.mxu0 0.0
    %1681 = vmatprep.mubr.f32.mxu0 0.0
    %1682 = vmatmul.mubr.f32.gmra.mrb[0].mxu0 %v1615
    %v1683 = vpop.f32.mrb[0].mxu0
    %v1684 = vadd.f32 %v1611, %v1683
    %v1685 = vpop.f32.mrb[0].mxu0
    %1686 = vdwg.mxu0
    %v1687 = vxor.u32 %v1684, 2147483648
    %v1688 = vmul.f32 %v1687, 1.442695
    %v1689 = vpow.pop %v1688
    %v1690 = vadd.f32 %v1689, 1.0
    %v1691 = vrcp.pop %v1690
    %v1692 = vmul.f32 1.0, %v1691
    %v1693 = vtanh.pop %v1684
    %1695 = vrot.lane.b32.xlu0 %v145, 32
    %v1696 = vpop.permute.xlu0 %1695
    %v1698 = vmul.f32 %v1692, %v1696
    %1700 = vrot.lane.b32.xlu0 %v1693, 64
    %v1701 = vpop.permute.xlu0 %1700
    %v1703 = vmul.f32 %v1692, %v1701
    %1705 = vrot.lane.b32.xlu0 %v1703, 32
    %v1706 = vpop.permute.xlu0 %1705
    %v1708 = vadd.f32 %v1698, %v1706
    %v1709 = vtanh.pop %v1708
    %1711 = vrot.lane.b32.xlu0 %v1709, 64
    %v1712 = vpop.permute.xlu0 %1711
    %v1714 = vmul.f32 %v1692, %v1712
    %1717 = vrot.lane.b32.xlu0 %v1714, 96
    %v1718 = vpop.permute.xlu0 %1717
    %1721 = vrot.lane.b32.xlu0 %v1708, 64
    %v1722 = vpop.permute.xlu0 %1721
    %v1724 = vsel %vm160, %v302, %v282
    %v1725 = vsel %vm162, %v1724, %v1718
    %v1726 = vsel %vm1613, %v1725, %v1722
    %1727 = vst [vmem:[#allocation15] sm:$0xff] %v1726
    // Predicated region
    $region86: #{tpu_custom_call.1} parent=1 // pred_check
      _
    $region87: #{tpu_custom_call.1} parent=1 // pred_check_branch
      %1729 = sbr.rel (0) target = $region89
    $region88: #{tpu_custom_call.1} parent=1 // pred_region
      %s1731 = ssub.s32 128, 128
      %1732 = vsyncadd [#allocation5], %s1731
      %s1734 = sshll.u32 [#allocation15], 4
      %s1735 = int_to_ptr.vmem [resolvable:$true] %s1734
      %1737 = dma.vmem_to_hbm [thread:$0]  %s1735, 128, %s14, [#allocation5]
    $region89: #{tpu_custom_call.1} parent=1 // pred_fallthru
      _
    // Predicated region
    $region90: #{tpu_custom_call.1} parent=1 // pred_check
      _
    $region91: #{tpu_custom_call.1} parent=1 // pred_check_branch
      %1739 = sbr.rel (0) target = $region93
    $region92: #{tpu_custom_call.1} parent=1 // pred_region
      %1740 = dma.done [#allocation5], 128
    $region93: #{tpu_custom_call.1} parent=1 // pred_fallthru
      _
    %1741 = vsyncpa [#allocation4], 1
    %1742 = vsyncpa [#allocation7], 1
    %1743 = vsyncpa [#allocation10], 1
    %1744 = vsyncpa [#allocation13], 1
    %1745 = vsyncpa [#allocation5], 1

</llo_original>
